<compile_context>
chip_gen: v5e
topology: v5e:2x2
jax: 0.10.0
libtpu: 0.0.40
codegen_flags: <defaults>
</compile_context>

<pallas_src>
import functools

import jax
import jax.numpy as jnp
from jax import lax
from jax.experimental import pallas as pl
from jax.experimental.pallas import tpu as pltpu


def _attention_kernel(xq_ref, xf_ref, wq_ref, wk_ref, wv_ref, wproj_ref,
                      bproj_ref, mask_ref, o_ref, k_sc, v_sc,
                      *, num_heads, scale):
    """One grid step = (batch element b, query tile qi)."""
    qi = pl.program_id(1)

    # --- K/V projection: once per batch element, resident in VMEM scratch ---
    @pl.when(qi == 0)
    def _():
        xf = xf_ref[...]                                            # (N, C) bf16
        k_sc[...] = jnp.dot(xf, wk_ref[...],
                            preferred_element_type=jnp.float32).astype(k_sc.dtype)
        v_sc[...] = jnp.dot(xf, wv_ref[...],
                            preferred_element_type=jnp.float32).astype(v_sc.dtype)

    TQ, C = xq_ref.shape
    Dh = C // num_heads

    # --- Q projection for this query tile (scale folded in once, in f32) ---
    q = jnp.dot(xq_ref[...], wq_ref[...],
                preferred_element_type=jnp.float32) * scale          # (TQ, C) f32
    q = q.astype(jnp.bfloat16)

    mask = mask_ref[...]                                             # (TQ, N) f32, hoisted

    # Output accumulator seeded with the projection bias (broadcast once,
    # outside the head loop).
    acc = jnp.broadcast_to(bproj_ref[...], (TQ, C)).astype(jnp.float32)

    for h in range(num_heads):                                       # static unroll
        sl = slice(h * Dh, (h + 1) * Dh)
        # scores: contract head_dim of q and K directly (no k transpose)
        s = lax.dot_general(q[:, sl], k_sc[:, sl],
                            (((1,), (1,)), ((), ())),
                            preferred_element_type=jnp.float32)      # (TQ, N) f32
        s = s + mask                                                 # additive mask
        # numerically-stable softmax, all in f32 on the VPU/EUP
        s = s - jnp.max(s, axis=-1, keepdims=True)
        p = jnp.exp(s)
        denom = jnp.sum(p, axis=-1, keepdims=True)
        p = (p * pl.reciprocal(denom, approx=True)).astype(jnp.bfloat16)
        # TODO(synk): attn_drop / proj_drop have p=0.0 -> identity; no dropout emitted.
        head_out = jnp.dot(p, v_sc[:, sl],
                           preferred_element_type=jnp.float32)       # (TQ, Dh) f32
        # Fold the output projection into the head loop (no concat / relayout).
        acc = acc + jnp.dot(head_out.astype(jnp.bfloat16), wproj_ref[sl, :],
                            preferred_element_type=jnp.float32)

    o_ref[...] = acc.astype(o_ref.dtype)


def _pick_query_tile(n, max_tile=128):
    """Largest tile <= max_tile that divides N and keeps (8,128) tiling legal."""
    if n <= max_tile:
        return n                       # block == full dim is always legal
    for t in (128, 64, 32, 16, 8):     # multiples of 8 -> sublane-aligned
        if n % t == 0:
            return t
    return n                           # fallback: one tile for the whole sequence


def attention_selfmask(x, w_qkv, w_proj, b_proj, mask, num_heads):
    """x: (B, N, C); w_qkv: (3C, C); w_proj: (C, C); b_proj: (C,); mask: (N, N)."""
    B, N, C = x.shape
    assert C % num_heads == 0, "C must be divisible by num_heads"
    head_dim = C // num_heads
    scale = head_dim ** (-0.5)

    # Query tile: keeps per-step VMEM roughly constant for long sequences.
    TQ = _pick_query_tile(N)
    num_q_tiles = N // TQ

    # bf16 MXU operands (f32 accumulate happens inside the kernel).
    cdt = jnp.bfloat16
    x_c = x.astype(cdt)
    wq_t = w_qkv[:C].T.astype(cdt)            # (C, C)
    wk_t = w_qkv[C:2 * C].T.astype(cdt)       # (C, C)
    wv_t = w_qkv[2 * C:].T.astype(cdt)        # (C, C)
    wp_t = w_proj.T.astype(cdt)               # (C, C)
    b_p = b_proj.reshape(1, C).astype(jnp.float32)
    mask_f = mask.astype(jnp.float32)         # keep mask in f32 for exact add

    kernel = functools.partial(_attention_kernel,
                               num_heads=num_heads, scale=scale)

    # Explicit VMEM budget (double-buffered pipeline bufs + K/V scratch),
    # clamped below physical VMEM (v7x: 64 MiB total).
    est = (2 * (TQ * C * 2            # x query tile (bf16)
                + N * C * 2           # x full tile for K/V projection (bf16)
                + 4 * C * C * 2       # W_q, W_k, W_v, W_proj (bf16)
                + C * 4               # bias (f32)
                + TQ * N * 4          # mask tile (f32)
                + TQ * C * 4)         # output tile (f32)
           + 2 * N * C * 2)           # K/V scratch (bf16)
    vmem_limit = int(min(100 * 1024 * 1024, max(32 * 1024 * 1024, 2 * est)))

    return pl.pallas_call(
        kernel,
        out_shape=jax.ShapeDtypeStruct((B, N, C), x.dtype),
        grid_spec=pltpu.PrefetchScalarGridSpec(
            num_scalar_prefetch=0,
            grid=(B, num_q_tiles),
            in_specs=[
                pl.BlockSpec((None, TQ, C), lambda b, q: (b, q, 0)),  # x (query tile)
                pl.BlockSpec((None, N, C), lambda b, q: (b, 0, 0)),   # x (full, for K/V)
                pl.BlockSpec((C, C), lambda b, q: (0, 0)),            # W_q.T
                pl.BlockSpec((C, C), lambda b, q: (0, 0)),            # W_k.T
                pl.BlockSpec((C, C), lambda b, q: (0, 0)),            # W_v.T
                pl.BlockSpec((C, C), lambda b, q: (0, 0)),            # W_proj.T
                pl.BlockSpec((1, C), lambda b, q: (0, 0)),            # b_proj
                pl.BlockSpec((TQ, N), lambda b, q: (q, 0)),           # mask (query rows)
            ],
            out_specs=pl.BlockSpec((None, TQ, C), lambda b, q: (b, q, 0)),
            scratch_shapes=[
                pltpu.VMEM((N, C), cdt),   # K, resident per batch element
                pltpu.VMEM((N, C), cdt),   # V, resident per batch element
            ],
        ),
        compiler_params=pltpu.CompilerParams(
            dimension_semantics=("parallel", "arbitrary"),
            vmem_limit_bytes=vmem_limit),
    )(x_c, x_c, wq_t, wk_t, wv_t, wp_t, b_p, mask_f)


def _reference(x, w_qkv, w_proj, b_proj, mask, num_heads):
    """Pure-JAX f32 mirror of the PyTorch forward for verification."""
    B, N, C = x.shape
    head_dim = C // num_heads
    scale = head_dim ** (-0.5)
    qkv = x @ w_qkv.T                                   # (B, N, 3C)
    qkv = qkv.reshape(B, N, 3, num_heads, head_dim)
    qkv = jnp.transpose(qkv, (2, 0, 3, 1, 4))           # (3, B, H, N, Dh)
    q, k, v = qkv[0], qkv[1], qkv[2]
    attn = jnp.einsum('bhnd,bhmd->bhnm', q, k) * scale
    attn = attn + mask[None, None]                      # broadcast (N,N)
    attn = jax.nn.softmax(attn, axis=-1)
    out = jnp.einsum('bhnm,bhmd->bhnd', attn, v)
    out = jnp.transpose(out, (0, 2, 1, 3)).reshape(B, N, C)
    return out @ w_proj.T + b_proj


if __name__ == "__main__":
    B, N, C, H = 2, 8, 32, 8
    key = jax.random.PRNGKey(0)
    k1, k2, k3, k4, k5 = jax.random.split(key, 5)

    x = jax.random.normal(k1, (B, N, C), jnp.float32)
    w_qkv = jax.random.normal(k2, (3 * C, C), jnp.float32) * 0.05
    w_proj = jax.random.normal(k3, (C, C), jnp.float32) * 0.05
    b_proj = jax.random.normal(k4, (C,), jnp.float32) * 0.05
    # additive attention mask, broadcast over batch and heads (like torch)
    mask = jnp.where(jax.random.uniform(k5, (N, N)) < 0.2, -1e9, 0.0
                     ).astype(jnp.float32)

    out = attention_selfmask(x, w_qkv, w_proj, b_proj, mask, H)
    out = jax.block_until_ready(out)

    ref = _reference(x, w_qkv, w_proj, b_proj, mask, H)
    assert out.shape == (B, N, C)
    # bf16 MXU operands => relaxed tolerance vs. f32 reference.
    assert jnp.allclose(out, ref, atol=2e-2, rtol=2e-2), "mismatch vs reference"

    print("KERNEL_OK")
</pallas_src>

<mosaic_0001>
module attributes {stable_mosaic.version = 11 : i64} {
  func.func @_attention_kernel(%arg0: i32, %arg1: i32, %arg2: memref<1x8x32xbf16, #tpu.memory_space<vmem>>, %arg3: memref<1x8x32xbf16, #tpu.memory_space<vmem>>, %arg4: memref<32x32xbf16, #tpu.memory_space<vmem>>, %arg5: memref<32x32xbf16, #tpu.memory_space<vmem>>, %arg6: memref<32x32xbf16, #tpu.memory_space<vmem>>, %arg7: memref<32x32xbf16, #tpu.memory_space<vmem>>, %arg8: memref<1x32xf32, #tpu.memory_space<vmem>>, %arg9: memref<8x8xf32, #tpu.memory_space<vmem>>, %arg10: memref<1x8x32xf32, #tpu.memory_space<vmem>>, %arg11: memref<8x32xbf16, #tpu.memory_space<vmem>>, %arg12: memref<8x32xbf16, #tpu.memory_space<vmem>>) attributes {dimension_semantics = [#tpu.dimension_semantics<parallel>, #tpu.dimension_semantics<arbitrary>], iteration_bounds = array<i64: 2, 1>, scalar_prefetch = 0 : i64, scratch_operands = 2 : i64, tpu.core_type = #tpu.core_type<tc>, window_params = [{transform_indices = @transform_0, window_bounds = array<i64: 1, 8, 32>}, {transform_indices = @transform_1, window_bounds = array<i64: 1, 8, 32>}, {pipeline_mode = #tpu.pipeline_mode<synchronous>, transform_indices = @transform_2, window_bounds = array<i64: 32, 32>}, {pipeline_mode = #tpu.pipeline_mode<synchronous>, transform_indices = @transform_3, window_bounds = array<i64: 32, 32>}, {pipeline_mode = #tpu.pipeline_mode<synchronous>, transform_indices = @transform_4, window_bounds = array<i64: 32, 32>}, {pipeline_mode = #tpu.pipeline_mode<synchronous>, transform_indices = @transform_5, window_bounds = array<i64: 32, 32>}, {pipeline_mode = #tpu.pipeline_mode<synchronous>, transform_indices = @transform_6, window_bounds = array<i64: 1, 32>}, {transform_indices = @transform_7, window_bounds = array<i64: 8, 8>}, {transform_indices = @transform_8, window_bounds = array<i64: 1, 8, 32>}]} {
    %c0_i32 = arith.constant 0 : i32
    %0 = arith.cmpi eq, %arg1, %c0_i32 : i32
    %1 = arith.extui %0 : i1 to i32
    %c0_i32_0 = arith.constant 0 : i32
    %2 = arith.cmpi ne, %1, %c0_i32_0 : i32
    scf.if %2 {
      %c0_94 = arith.constant 0 : index
      %c0_95 = arith.constant 0 : index
      %c0_96 = arith.constant 0 : index
      %185 = vector.load %arg3[%c0_94, %c0_95, %c0_96] : memref<1x8x32xbf16, #tpu.memory_space<vmem>>, vector<1x8x32xbf16>
      %186 = vector.shape_cast %185 : vector<1x8x32xbf16> to vector<8x32xbf16>
      %c0_97 = arith.constant 0 : index
      %c0_98 = arith.constant 0 : index
      %187 = vector.load %arg5[%c0_97, %c0_98] : memref<32x32xbf16, #tpu.memory_space<vmem>>, vector<32x32xbf16>
      %cst_99 = arith.constant dense<0.000000e+00> : vector<8x32xf32>
      %188 = tpu.matmul %186, %187, %cst_99 {dimension_numbers = #tpu.dot_dimension_numbers<[1], [0], [0], [1], [0, 0, 1, 1], [], []>} : vector<8x32xbf16>, vector<32x32xbf16>, vector<8x32xf32> -> vector<8x32xf32>
      %189 = arith.truncf %188 : vector<8x32xf32> to vector<8x32xbf16>
      %c0_100 = arith.constant 0 : index
      %c0_101 = arith.constant 0 : index
      %190 = vector.load %arg11[%c0_100, %c0_101] : memref<8x32xbf16, #tpu.memory_space<vmem>>, vector<8x32xbf16>
      tpu.vector_store %arg11[%c0_100, %c0_101], %189 {strides = array<i32>} : memref<8x32xbf16, #tpu.memory_space<vmem>>, vector<8x32xbf16>,
      %c0_102 = arith.constant 0 : index
      %c0_103 = arith.constant 0 : index
      %191 = vector.load %arg6[%c0_102, %c0_103] : memref<32x32xbf16, #tpu.memory_space<vmem>>, vector<32x32xbf16>
      %cst_104 = arith.constant dense<0.000000e+00> : vector<8x32xf32>
      %192 = tpu.matmul %186, %191, %cst_104 {dimension_numbers = #tpu.dot_dimension_numbers<[1], [0], [0], [1], [0, 0, 1, 1], [], []>} : vector<8x32xbf16>, vector<32x32xbf16>, vector<8x32xf32> -> vector<8x32xf32>
      %193 = arith.truncf %192 : vector<8x32xf32> to vector<8x32xbf16>
      %c0_105 = arith.constant 0 : index
      %c0_106 = arith.constant 0 : index
      %194 = vector.load %arg12[%c0_105, %c0_106] : memref<8x32xbf16, #tpu.memory_space<vmem>>, vector<8x32xbf16>
      tpu.vector_store %arg12[%c0_105, %c0_106], %193 {strides = array<i32>} : memref<8x32xbf16, #tpu.memory_space<vmem>>, vector<8x32xbf16>,
    } else {
    }
    %c0 = arith.constant 0 : index
    %c0_1 = arith.constant 0 : index
    %c0_2 = arith.constant 0 : index
    %3 = vector.load %arg2[%c0, %c0_1, %c0_2] : memref<1x8x32xbf16, #tpu.memory_space<vmem>>, vector<1x8x32xbf16>
    %4 = vector.shape_cast %3 : vector<1x8x32xbf16> to vector<8x32xbf16>
    %c0_3 = arith.constant 0 : index
    %c0_4 = arith.constant 0 : index
    %5 = vector.load %arg4[%c0_3, %c0_4] : memref<32x32xbf16, #tpu.memory_space<vmem>>, vector<32x32xbf16>
    %cst = arith.constant dense<0.000000e+00> : vector<8x32xf32>
    %6 = tpu.matmul %4, %5, %cst {dimension_numbers = #tpu.dot_dimension_numbers<[1], [0], [0], [1], [0, 0, 1, 1], [], []>} : vector<8x32xbf16>, vector<32x32xbf16>, vector<8x32xf32> -> vector<8x32xf32>
    %cst_5 = arith.constant 5.000000e-01 : f32
    %7 = vector.broadcast %cst_5 : f32 to vector<8x32xf32>
    %8 = arith.mulf %6, %7 : vector<8x32xf32>
    %9 = arith.truncf %8 : vector<8x32xf32> to vector<8x32xbf16>
    %c0_6 = arith.constant 0 : index
    %c0_7 = arith.constant 0 : index
    %10 = vector.load %arg9[%c0_6, %c0_7] : memref<8x8xf32, #tpu.memory_space<vmem>>, vector<8x8xf32>
    %c0_8 = arith.constant 0 : index
    %c0_9 = arith.constant 0 : index
    %11 = vector.load %arg8[%c0_8, %c0_9] : memref<1x32xf32, #tpu.memory_space<vmem>>, vector<1x32xf32>
    %12 = vector.shape_cast %11 : vector<1x32xf32> to vector<1x32xf32>
    %13 = vector.broadcast %12 : vector<1x32xf32> to vector<8x32xf32>
    %14 = vector.extract_strided_slice %9 {offsets = [0, 0], sizes = [8, 4], strides = [1, 1]} : vector<8x32xbf16> to vector<8x4xbf16>
    %c0_10 = arith.constant 0 : index
    %c0_11 = arith.constant 0 : index
    %15 = vector.load %arg11[%c0_10, %c0_11] : memref<8x32xbf16, #tpu.memory_space<vmem>>, vector<8x4xbf16>
    %cst_12 = arith.constant dense<0.000000e+00> : vector<8x8xf32>
    %16 = tpu.matmul %14, %15, %cst_12 {dimension_numbers = #tpu.dot_dimension_numbers<[1], [1], [0], [0], [0, 0, 1, 0], [], []>} : vector<8x4xbf16>, vector<8x4xbf16>, vector<8x8xf32> -> vector<8x8xf32>
    %17 = arith.addf %16, %10 : vector<8x8xf32>
    %cst_13 = arith.constant dense<0xFF800000> : vector<8xf32>
    %18 = vector.multi_reduction <maximumf>, %17, %cst_13 [1] : vector<8x8xf32> to vector<8xf32>
    %19 = vector.shape_cast %18 : vector<8xf32> to vector<8x1xf32>
    %20 = vector.broadcast %19 : vector<8x1xf32> to vector<8x8xf32>
    %21 = arith.subf %17, %20 : vector<8x8xf32>
    %22 = math.exp %21 : vector<8x8xf32>
    %cst_14 = arith.constant dense<0.000000e+00> : vector<8xf32>
    %23 = vector.multi_reduction <add>, %22, %cst_14 [1] : vector<8x8xf32> to vector<8xf32>
    %24 = vector.shape_cast %23 : vector<8xf32> to vector<8x1xf32>
    %25 = tpu.reciprocal %24 {approx = true} : vector<8x1xf32> -> vector<8x1xf32>
    %26 = vector.broadcast %25 : vector<8x1xf32> to vector<8x8xf32>
    %27 = arith.mulf %22, %26 : vector<8x8xf32>
    %28 = arith.truncf %27 : vector<8x8xf32> to vector<8x8xbf16>
    %c0_15 = arith.constant 0 : index
    %c0_16 = arith.constant 0 : index
    %29 = vector.load %arg12[%c0_15, %c0_16] : memref<8x32xbf16, #tpu.memory_space<vmem>>, vector<8x4xbf16>
    %cst_17 = arith.constant dense<0.000000e+00> : vector<8x4xf32>
    %30 = tpu.matmul %28, %29, %cst_17 {dimension_numbers = #tpu.dot_dimension_numbers<[1], [0], [0], [1], [0, 0, 1, 1], [], []>} : vector<8x8xbf16>, vector<8x4xbf16>, vector<8x4xf32> -> vector<8x4xf32>
    %31 = arith.truncf %30 : vector<8x4xf32> to vector<8x4xbf16>
    %c0_18 = arith.constant 0 : index
    %c0_19 = arith.constant 0 : index
    %32 = vector.load %arg7[%c0_18, %c0_19] : memref<32x32xbf16, #tpu.memory_space<vmem>>, vector<4x32xbf16>
    %cst_20 = arith.constant dense<0.000000e+00> : vector<8x32xf32>
    %33 = tpu.matmul %31, %32, %cst_20 {dimension_numbers = #tpu.dot_dimension_numbers<[1], [0], [0], [1], [0, 0, 1, 1], [], []>} : vector<8x4xbf16>, vector<4x32xbf16>, vector<8x32xf32> -> vector<8x32xf32>
    %34 = arith.addf %13, %33 : vector<8x32xf32>
    %35 = vector.extract_strided_slice %9 {offsets = [0, 4], sizes = [8, 4], strides = [1, 1]} : vector<8x32xbf16> to vector<8x4xbf16>
    %c0_21 = arith.constant 0 : index
    %c4 = arith.constant 4 : index
    %36 = vector.load %arg11[%c0_21, %c4] : memref<8x32xbf16, #tpu.memory_space<vmem>>, vector<8x4xbf16>
    %cst_22 = arith.constant dense<0.000000e+00> : vector<8x8xf32>
    %37 = tpu.matmul %35, %36, %cst_22 {dimension_numbers = #tpu.dot_dimension_numbers<[1], [1], [0], [0], [0, 0, 1, 0], [], []>} : vector<8x4xbf16>, vector<8x4xbf16>, vector<8x8xf32> -> vector<8x8xf32>
    %38 = arith.addf %37, %10 : vector<8x8xf32>
    %cst_23 = arith.constant dense<0xFF800000> : vector<8xf32>
    %39 = vector.multi_reduction <maximumf>, %38, %cst_23 [1] : vector<8x8xf32> to vector<8xf32>
    %40 = vector.shape_cast %39 : vector<8xf32> to vector<8x1xf32>
    %41 = vector.broadcast %40 : vector<8x1xf32> to vector<8x8xf32>
    %42 = arith.subf %38, %41 : vector<8x8xf32>
    %43 = math.exp %42 : vector<8x8xf32>
    %cst_24 = arith.constant dense<0.000000e+00> : vector<8xf32>
    %44 = vector.multi_reduction <add>, %43, %cst_24 [1] : vector<8x8xf32> to vector<8xf32>
    %45 = vector.shape_cast %44 : vector<8xf32> to vector<8x1xf32>
    %46 = tpu.reciprocal %45 {approx = true} : vector<8x1xf32> -> vector<8x1xf32>
    %47 = vector.broadcast %46 : vector<8x1xf32> to vector<8x8xf32>
    %48 = arith.mulf %43, %47 : vector<8x8xf32>
    %49 = arith.truncf %48 : vector<8x8xf32> to vector<8x8xbf16>
    %c0_25 = arith.constant 0 : index
    %c4_26 = arith.constant 4 : index
    %50 = vector.load %arg12[%c0_25, %c4_26] : memref<8x32xbf16, #tpu.memory_space<vmem>>, vector<8x4xbf16>
    %cst_27 = arith.constant dense<0.000000e+00> : vector<8x4xf32>
    %51 = tpu.matmul %49, %50, %cst_27 {dimension_numbers = #tpu.dot_dimension_numbers<[1], [0], [0], [1], [0, 0, 1, 1], [], []>} : vector<8x8xbf16>, vector<8x4xbf16>, vector<8x4xf32> -> vector<8x4xf32>
    %52 = arith.truncf %51 : vector<8x4xf32> to vector<8x4xbf16>
    %c4_28 = arith.constant 4 : index
    %c0_29 = arith.constant 0 : index
    %53 = vector.load %arg7[%c4_28, %c0_29] : memref<32x32xbf16, #tpu.memory_space<vmem>>, vector<4x32xbf16>
    %cst_30 = arith.constant dense<0.000000e+00> : vector<8x32xf32>
    %54 = tpu.matmul %52, %53, %cst_30 {dimension_numbers = #tpu.dot_dimension_numbers<[1], [0], [0], [1], [0, 0, 1, 1], [], []>} : vector<8x4xbf16>, vector<4x32xbf16>, vector<8x32xf32> -> vector<8x32xf32>
    %55 = arith.addf %34, %54 : vector<8x32xf32>
    %56 = vector.extract_strided_slice %9 {offsets = [0, 8], sizes = [8, 4], strides = [1, 1]} : vector<8x32xbf16> to vector<8x4xbf16>
    %c0_31 = arith.constant 0 : index
    %c8 = arith.constant 8 : index
    %57 = vector.load %arg11[%c0_31, %c8] : memref<8x32xbf16, #tpu.memory_space<vmem>>, vector<8x4xbf16>
    %cst_32 = arith.constant dense<0.000000e+00> : vector<8x8xf32>
    %58 = tpu.matmul %56, %57, %cst_32 {dimension_numbers = #tpu.dot_dimension_numbers<[1], [1], [0], [0], [0, 0, 1, 0], [], []>} : vector<8x4xbf16>, vector<8x4xbf16>, vector<8x8xf32> -> vector<8x8xf32>
    %59 = arith.addf %58, %10 : vector<8x8xf32>
    %cst_33 = arith.constant dense<0xFF800000> : vector<8xf32>
    %60 = vector.multi_reduction <maximumf>, %59, %cst_33 [1] : vector<8x8xf32> to vector<8xf32>
    %61 = vector.shape_cast %60 : vector<8xf32> to vector<8x1xf32>
    %62 = vector.broadcast %61 : vector<8x1xf32> to vector<8x8xf32>
    %63 = arith.subf %59, %62 : vector<8x8xf32>
    %64 = math.exp %63 : vector<8x8xf32>
    %cst_34 = arith.constant dense<0.000000e+00> : vector<8xf32>
    %65 = vector.multi_reduction <add>, %64, %cst_34 [1] : vector<8x8xf32> to vector<8xf32>
    %66 = vector.shape_cast %65 : vector<8xf32> to vector<8x1xf32>
    %67 = tpu.reciprocal %66 {approx = true} : vector<8x1xf32> -> vector<8x1xf32>
    %68 = vector.broadcast %67 : vector<8x1xf32> to vector<8x8xf32>
    %69 = arith.mulf %64, %68 : vector<8x8xf32>
    %70 = arith.truncf %69 : vector<8x8xf32> to vector<8x8xbf16>
    %c0_35 = arith.constant 0 : index
    %c8_36 = arith.constant 8 : index
    %71 = vector.load %arg12[%c0_35, %c8_36] : memref<8x32xbf16, #tpu.memory_space<vmem>>, vector<8x4xbf16>
    %cst_37 = arith.constant dense<0.000000e+00> : vector<8x4xf32>
    %72 = tpu.matmul %70, %71, %cst_37 {dimension_numbers = #tpu.dot_dimension_numbers<[1], [0], [0], [1], [0, 0, 1, 1], [], []>} : vector<8x8xbf16>, vector<8x4xbf16>, vector<8x4xf32> -> vector<8x4xf32>
    %73 = arith.truncf %72 : vector<8x4xf32> to vector<8x4xbf16>
    %c8_38 = arith.constant 8 : index
    %c0_39 = arith.constant 0 : index
    %74 = vector.load %arg7[%c8_38, %c0_39] : memref<32x32xbf16, #tpu.memory_space<vmem>>, vector<4x32xbf16>
    %cst_40 = arith.constant dense<0.000000e+00> : vector<8x32xf32>
    %75 = tpu.matmul %73, %74, %cst_40 {dimension_numbers = #tpu.dot_dimension_numbers<[1], [0], [0], [1], [0, 0, 1, 1], [], []>} : vector<8x4xbf16>, vector<4x32xbf16>, vector<8x32xf32> -> vector<8x32xf32>
    %76 = arith.addf %55, %75 : vector<8x32xf32>
    %77 = vector.extract_strided_slice %9 {offsets = [0, 12], sizes = [8, 4], strides = [1, 1]} : vector<8x32xbf16> to vector<8x4xbf16>
    %c0_41 = arith.constant 0 : index
    %c12 = arith.constant 12 : index
    %78 = vector.load %arg11[%c0_41, %c12] : memref<8x32xbf16, #tpu.memory_space<vmem>>, vector<8x4xbf16>
    %cst_42 = arith.constant dense<0.000000e+00> : vector<8x8xf32>
    %79 = tpu.matmul %77, %78, %cst_42 {dimension_numbers = #tpu.dot_dimension_numbers<[1], [1], [0], [0], [0, 0, 1, 0], [], []>} : vector<8x4xbf16>, vector<8x4xbf16>, vector<8x8xf32> -> vector<8x8xf32>
    %80 = arith.addf %79, %10 : vector<8x8xf32>
    %cst_43 = arith.constant dense<0xFF800000> : vector<8xf32>
    %81 = vector.multi_reduction <maximumf>, %80, %cst_43 [1] : vector<8x8xf32> to vector<8xf32>
    %82 = vector.shape_cast %81 : vector<8xf32> to vector<8x1xf32>
    %83 = vector.broadcast %82 : vector<8x1xf32> to vector<8x8xf32>
    %84 = arith.subf %80, %83 : vector<8x8xf32>
    %85 = math.exp %84 : vector<8x8xf32>
    %cst_44 = arith.constant dense<0.000000e+00> : vector<8xf32>
    %86 = vector.multi_reduction <add>, %85, %cst_44 [1] : vector<8x8xf32> to vector<8xf32>
    %87 = vector.shape_cast %86 : vector<8xf32> to vector<8x1xf32>
    %88 = tpu.reciprocal %87 {approx = true} : vector<8x1xf32> -> vector<8x1xf32>
    %89 = vector.broadcast %88 : vector<8x1xf32> to vector<8x8xf32>
    %90 = arith.mulf %85, %89 : vector<8x8xf32>
    %91 = arith.truncf %90 : vector<8x8xf32> to vector<8x8xbf16>
    %c0_45 = arith.constant 0 : index
    %c12_46 = arith.constant 12 : index
    %92 = vector.load %arg12[%c0_45, %c12_46] : memref<8x32xbf16, #tpu.memory_space<vmem>>, vector<8x4xbf16>
    %cst_47 = arith.constant dense<0.000000e+00> : vector<8x4xf32>
    %93 = tpu.matmul %91, %92, %cst_47 {dimension_numbers = #tpu.dot_dimension_numbers<[1], [0], [0], [1], [0, 0, 1, 1], [], []>} : vector<8x8xbf16>, vector<8x4xbf16>, vector<8x4xf32> -> vector<8x4xf32>
    %94 = arith.truncf %93 : vector<8x4xf32> to vector<8x4xbf16>
    %c12_48 = arith.constant 12 : index
    %c0_49 = arith.constant 0 : index
    %95 = vector.load %arg7[%c12_48, %c0_49] : memref<32x32xbf16, #tpu.memory_space<vmem>>, vector<4x32xbf16>
    %cst_50 = arith.constant dense<0.000000e+00> : vector<8x32xf32>
    %96 = tpu.matmul %94, %95, %cst_50 {dimension_numbers = #tpu.dot_dimension_numbers<[1], [0], [0], [1], [0, 0, 1, 1], [], []>} : vector<8x4xbf16>, vector<4x32xbf16>, vector<8x32xf32> -> vector<8x32xf32>
    %97 = arith.addf %76, %96 : vector<8x32xf32>
    %98 = vector.extract_strided_slice %9 {offsets = [0, 16], sizes = [8, 4], strides = [1, 1]} : vector<8x32xbf16> to vector<8x4xbf16>
    %c0_51 = arith.constant 0 : index
    %c16 = arith.constant 16 : index
    %99 = vector.load %arg11[%c0_51, %c16] : memref<8x32xbf16, #tpu.memory_space<vmem>>, vector<8x4xbf16>
    %cst_52 = arith.constant dense<0.000000e+00> : vector<8x8xf32>
    %100 = tpu.matmul %98, %99, %cst_52 {dimension_numbers = #tpu.dot_dimension_numbers<[1], [1], [0], [0], [0, 0, 1, 0], [], []>} : vector<8x4xbf16>, vector<8x4xbf16>, vector<8x8xf32> -> vector<8x8xf32>
    %101 = arith.addf %100, %10 : vector<8x8xf32>
    %cst_53 = arith.constant dense<0xFF800000> : vector<8xf32>
    %102 = vector.multi_reduction <maximumf>, %101, %cst_53 [1] : vector<8x8xf32> to vector<8xf32>
    %103 = vector.shape_cast %102 : vector<8xf32> to vector<8x1xf32>
    %104 = vector.broadcast %103 : vector<8x1xf32> to vector<8x8xf32>
    %105 = arith.subf %101, %104 : vector<8x8xf32>
    %106 = math.exp %105 : vector<8x8xf32>
    %cst_54 = arith.constant dense<0.000000e+00> : vector<8xf32>
    %107 = vector.multi_reduction <add>, %106, %cst_54 [1] : vector<8x8xf32> to vector<8xf32>
    %108 = vector.shape_cast %107 : vector<8xf32> to vector<8x1xf32>
    %109 = tpu.reciprocal %108 {approx = true} : vector<8x1xf32> -> vector<8x1xf32>
    %110 = vector.broadcast %109 : vector<8x1xf32> to vector<8x8xf32>
    %111 = arith.mulf %106, %110 : vector<8x8xf32>
    %112 = arith.truncf %111 : vector<8x8xf32> to vector<8x8xbf16>
    %c0_55 = arith.constant 0 : index
    %c16_56 = arith.constant 16 : index
    %113 = vector.load %arg12[%c0_55, %c16_56] : memref<8x32xbf16, #tpu.memory_space<vmem>>, vector<8x4xbf16>
    %cst_57 = arith.constant dense<0.000000e+00> : vector<8x4xf32>
    %114 = tpu.matmul %112, %113, %cst_57 {dimension_numbers = #tpu.dot_dimension_numbers<[1], [0], [0], [1], [0, 0, 1, 1], [], []>} : vector<8x8xbf16>, vector<8x4xbf16>, vector<8x4xf32> -> vector<8x4xf32>
    %115 = arith.truncf %114 : vector<8x4xf32> to vector<8x4xbf16>
    %c16_58 = arith.constant 16 : index
    %c0_59 = arith.constant 0 : index
    %116 = vector.load %arg7[%c16_58, %c0_59] : memref<32x32xbf16, #tpu.memory_space<vmem>>, vector<4x32xbf16>
    %cst_60 = arith.constant dense<0.000000e+00> : vector<8x32xf32>
    %117 = tpu.matmul %115, %116, %cst_60 {dimension_numbers = #tpu.dot_dimension_numbers<[1], [0], [0], [1], [0, 0, 1, 1], [], []>} : vector<8x4xbf16>, vector<4x32xbf16>, vector<8x32xf32> -> vector<8x32xf32>
    %118 = arith.addf %97, %117 : vector<8x32xf32>
    %119 = vector.extract_strided_slice %9 {offsets = [0, 20], sizes = [8, 4], strides = [1, 1]} : vector<8x32xbf16> to vector<8x4xbf16>
    %c0_61 = arith.constant 0 : index
    %c20 = arith.constant 20 : index
    %120 = vector.load %arg11[%c0_61, %c20] : memref<8x32xbf16, #tpu.memory_space<vmem>>, vector<8x4xbf16>
    %cst_62 = arith.constant dense<0.000000e+00> : vector<8x8xf32>
    %121 = tpu.matmul %119, %120, %cst_62 {dimension_numbers = #tpu.dot_dimension_numbers<[1], [1], [0], [0], [0, 0, 1, 0], [], []>} : vector<8x4xbf16>, vector<8x4xbf16>, vector<8x8xf32> -> vector<8x8xf32>
    %122 = arith.addf %121, %10 : vector<8x8xf32>
    %cst_63 = arith.constant dense<0xFF800000> : vector<8xf32>
    %123 = vector.multi_reduction <maximumf>, %122, %cst_63 [1] : vector<8x8xf32> to vector<8xf32>
    %124 = vector.shape_cast %123 : vector<8xf32> to vector<8x1xf32>
    %125 = vector.broadcast %124 : vector<8x1xf32> to vector<8x8xf32>
    %126 = arith.subf %122, %125 : vector<8x8xf32>
    %127 = math.exp %126 : vector<8x8xf32>
    %cst_64 = arith.constant dense<0.000000e+00> : vector<8xf32>
    %128 = vector.multi_reduction <add>, %127, %cst_64 [1] : vector<8x8xf32> to vector<8xf32>
    %129 = vector.shape_cast %128 : vector<8xf32> to vector<8x1xf32>
    %130 = tpu.reciprocal %129 {approx = true} : vector<8x1xf32> -> vector<8x1xf32>
    %131 = vector.broadcast %130 : vector<8x1xf32> to vector<8x8xf32>
    %132 = arith.mulf %127, %131 : vector<8x8xf32>
    %133 = arith.truncf %132 : vector<8x8xf32> to vector<8x8xbf16>
    %c0_65 = arith.constant 0 : index
    %c20_66 = arith.constant 20 : index
    %134 = vector.load %arg12[%c0_65, %c20_66] : memref<8x32xbf16, #tpu.memory_space<vmem>>, vector<8x4xbf16>
    %cst_67 = arith.constant dense<0.000000e+00> : vector<8x4xf32>
    %135 = tpu.matmul %133, %134, %cst_67 {dimension_numbers = #tpu.dot_dimension_numbers<[1], [0], [0], [1], [0, 0, 1, 1], [], []>} : vector<8x8xbf16>, vector<8x4xbf16>, vector<8x4xf32> -> vector<8x4xf32>
    %136 = arith.truncf %135 : vector<8x4xf32> to vector<8x4xbf16>
    %c20_68 = arith.constant 20 : index
    %c0_69 = arith.constant 0 : index
    %137 = vector.load %arg7[%c20_68, %c0_69] : memref<32x32xbf16, #tpu.memory_space<vmem>>, vector<4x32xbf16>
    %cst_70 = arith.constant dense<0.000000e+00> : vector<8x32xf32>
    %138 = tpu.matmul %136, %137, %cst_70 {dimension_numbers = #tpu.dot_dimension_numbers<[1], [0], [0], [1], [0, 0, 1, 1], [], []>} : vector<8x4xbf16>, vector<4x32xbf16>, vector<8x32xf32> -> vector<8x32xf32>
    %139 = arith.addf %118, %138 : vector<8x32xf32>
    %140 = vector.extract_strided_slice %9 {offsets = [0, 24], sizes = [8, 4], strides = [1, 1]} : vector<8x32xbf16> to vector<8x4xbf16>
    %c0_71 = arith.constant 0 : index
    %c24 = arith.constant 24 : index
    %141 = vector.load %arg11[%c0_71, %c24] : memref<8x32xbf16, #tpu.memory_space<vmem>>, vector<8x4xbf16>
    %cst_72 = arith.constant dense<0.000000e+00> : vector<8x8xf32>
    %142 = tpu.matmul %140, %141, %cst_72 {dimension_numbers = #tpu.dot_dimension_numbers<[1], [1], [0], [0], [0, 0, 1, 0], [], []>} : vector<8x4xbf16>, vector<8x4xbf16>, vector<8x8xf32> -> vector<8x8xf32>
    %143 = arith.addf %142, %10 : vector<8x8xf32>
    %cst_73 = arith.constant dense<0xFF800000> : vector<8xf32>
    %144 = vector.multi_reduction <maximumf>, %143, %cst_73 [1] : vector<8x8xf32> to vector<8xf32>
    %145 = vector.shape_cast %144 : vector<8xf32> to vector<8x1xf32>
    %146 = vector.broadcast %145 : vector<8x1xf32> to vector<8x8xf32>
    %147 = arith.subf %143, %146 : vector<8x8xf32>
    %148 = math.exp %147 : vector<8x8xf32>
    %cst_74 = arith.constant dense<0.000000e+00> : vector<8xf32>
    %149 = vector.multi_reduction <add>, %148, %cst_74 [1] : vector<8x8xf32> to vector<8xf32>
    %150 = vector.shape_cast %149 : vector<8xf32> to vector<8x1xf32>
    %151 = tpu.reciprocal %150 {approx = true} : vector<8x1xf32> -> vector<8x1xf32>
    %152 = vector.broadcast %151 : vector<8x1xf32> to vector<8x8xf32>
    %153 = arith.mulf %148, %152 : vector<8x8xf32>
    %154 = arith.truncf %153 : vector<8x8xf32> to vector<8x8xbf16>
    %c0_75 = arith.constant 0 : index
    %c24_76 = arith.constant 24 : index
    %155 = vector.load %arg12[%c0_75, %c24_76] : memref<8x32xbf16, #tpu.memory_space<vmem>>, vector<8x4xbf16>
    %cst_77 = arith.constant dense<0.000000e+00> : vector<8x4xf32>
    %156 = tpu.matmul %154, %155, %cst_77 {dimension_numbers = #tpu.dot_dimension_numbers<[1], [0], [0], [1], [0, 0, 1, 1], [], []>} : vector<8x8xbf16>, vector<8x4xbf16>, vector<8x4xf32> -> vector<8x4xf32>
    %157 = arith.truncf %156 : vector<8x4xf32> to vector<8x4xbf16>
    %c24_78 = arith.constant 24 : index
    %c0_79 = arith.constant 0 : index
    %158 = vector.load %arg7[%c24_78, %c0_79] : memref<32x32xbf16, #tpu.memory_space<vmem>>, vector<4x32xbf16>
    %cst_80 = arith.constant dense<0.000000e+00> : vector<8x32xf32>
    %159 = tpu.matmul %157, %158, %cst_80 {dimension_numbers = #tpu.dot_dimension_numbers<[1], [0], [0], [1], [0, 0, 1, 1], [], []>} : vector<8x4xbf16>, vector<4x32xbf16>, vector<8x32xf32> -> vector<8x32xf32>
    %160 = arith.addf %139, %159 : vector<8x32xf32>
    %161 = vector.extract_strided_slice %9 {offsets = [0, 28], sizes = [8, 4], strides = [1, 1]} : vector<8x32xbf16> to vector<8x4xbf16>
    %c0_81 = arith.constant 0 : index
    %c28 = arith.constant 28 : index
    %162 = vector.load %arg11[%c0_81, %c28] : memref<8x32xbf16, #tpu.memory_space<vmem>>, vector<8x4xbf16>
    %cst_82 = arith.constant dense<0.000000e+00> : vector<8x8xf32>
    %163 = tpu.matmul %161, %162, %cst_82 {dimension_numbers = #tpu.dot_dimension_numbers<[1], [1], [0], [0], [0, 0, 1, 0], [], []>} : vector<8x4xbf16>, vector<8x4xbf16>, vector<8x8xf32> -> vector<8x8xf32>
    %164 = arith.addf %163, %10 : vector<8x8xf32>
    %cst_83 = arith.constant dense<0xFF800000> : vector<8xf32>
    %165 = vector.multi_reduction <maximumf>, %164, %cst_83 [1] : vector<8x8xf32> to vector<8xf32>
    %166 = vector.shape_cast %165 : vector<8xf32> to vector<8x1xf32>
    %167 = vector.broadcast %166 : vector<8x1xf32> to vector<8x8xf32>
    %168 = arith.subf %164, %167 : vector<8x8xf32>
    %169 = math.exp %168 : vector<8x8xf32>
    %cst_84 = arith.constant dense<0.000000e+00> : vector<8xf32>
    %170 = vector.multi_reduction <add>, %169, %cst_84 [1] : vector<8x8xf32> to vector<8xf32>
    %171 = vector.shape_cast %170 : vector<8xf32> to vector<8x1xf32>
    %172 = tpu.reciprocal %171 {approx = true} : vector<8x1xf32> -> vector<8x1xf32>
    %173 = vector.broadcast %172 : vector<8x1xf32> to vector<8x8xf32>
    %174 = arith.mulf %169, %173 : vector<8x8xf32>
    %175 = arith.truncf %174 : vector<8x8xf32> to vector<8x8xbf16>
    %c0_85 = arith.constant 0 : index
    %c28_86 = arith.constant 28 : index
    %176 = vector.load %arg12[%c0_85, %c28_86] : memref<8x32xbf16, #tpu.memory_space<vmem>>, vector<8x4xbf16>
    %cst_87 = arith.constant dense<0.000000e+00> : vector<8x4xf32>
    %177 = tpu.matmul %175, %176, %cst_87 {dimension_numbers = #tpu.dot_dimension_numbers<[1], [0], [0], [1], [0, 0, 1, 1], [], []>} : vector<8x8xbf16>, vector<8x4xbf16>, vector<8x4xf32> -> vector<8x4xf32>
    %178 = arith.truncf %177 : vector<8x4xf32> to vector<8x4xbf16>
    %c28_88 = arith.constant 28 : index
    %c0_89 = arith.constant 0 : index
    %179 = vector.load %arg7[%c28_88, %c0_89] : memref<32x32xbf16, #tpu.memory_space<vmem>>, vector<4x32xbf16>
    %cst_90 = arith.constant dense<0.000000e+00> : vector<8x32xf32>
    %180 = tpu.matmul %178, %179, %cst_90 {dimension_numbers = #tpu.dot_dimension_numbers<[1], [0], [0], [1], [0, 0, 1, 1], [], []>} : vector<8x4xbf16>, vector<4x32xbf16>, vector<8x32xf32> -> vector<8x32xf32>
    %181 = arith.addf %160, %180 : vector<8x32xf32>
    %c0_91 = arith.constant 0 : index
    %c0_92 = arith.constant 0 : index
    %c0_93 = arith.constant 0 : index
    %182 = vector.load %arg10[%c0_91, %c0_92, %c0_93] : memref<1x8x32xf32, #tpu.memory_space<vmem>>, vector<1x8x32xf32>
    %183 = vector.shape_cast %182 : vector<1x8x32xf32> to vector<8x32xf32>
    %184 = vector.shape_cast %181 : vector<8x32xf32> to vector<1x8x32xf32>
    tpu.vector_store %arg10[%c0_91, %c0_92, %c0_93], %184 {strides = array<i32>} : memref<1x8x32xf32, #tpu.memory_space<vmem>>, vector<1x8x32xf32>,
    return
  }
  func.func @transform_0(%arg0: i32, %arg1: i32) -> (i32, i32, i32) {
    %c0_i32 = arith.constant 0 : i32
    %c0_i32_0 = arith.constant 0 : i32
    return %arg0, %arg1, %c0_i32 : i32, i32, i32
  }
  func.func @transform_1(%arg0: i32, %arg1: i32) -> (i32, i32, i32) {
    %c0_i32 = arith.constant 0 : i32
    %c0_i32_0 = arith.constant 0 : i32
    %c0_i32_1 = arith.constant 0 : i32
    return %arg0, %c0_i32, %c0_i32_0 : i32, i32, i32
  }
  func.func @transform_2(%arg0: i32, %arg1: i32) -> (i32, i32) {
    %c0_i32 = arith.constant 0 : i32
    %c0_i32_0 = arith.constant 0 : i32
    %c0_i32_1 = arith.constant 0 : i32
    return %c0_i32, %c0_i32_0 : i32, i32
  }
  func.func @transform_3(%arg0: i32, %arg1: i32) -> (i32, i32) {
    %c0_i32 = arith.constant 0 : i32
    %c0_i32_0 = arith.constant 0 : i32
    %c0_i32_1 = arith.constant 0 : i32
    return %c0_i32, %c0_i32_0 : i32, i32
  }
  func.func @transform_4(%arg0: i32, %arg1: i32) -> (i32, i32) {
    %c0_i32 = arith.constant 0 : i32
    %c0_i32_0 = arith.constant 0 : i32
    %c0_i32_1 = arith.constant 0 : i32
    return %c0_i32, %c0_i32_0 : i32, i32
  }
  func.func @transform_5(%arg0: i32, %arg1: i32) -> (i32, i32) {
    %c0_i32 = arith.constant 0 : i32
    %c0_i32_0 = arith.constant 0 : i32
    %c0_i32_1 = arith.constant 0 : i32
    return %c0_i32, %c0_i32_0 : i32, i32
  }
  func.func @transform_6(%arg0: i32, %arg1: i32) -> (i32, i32) {
    %c0_i32 = arith.constant 0 : i32
    %c0_i32_0 = arith.constant 0 : i32
    %c0_i32_1 = arith.constant 0 : i32
    return %c0_i32, %c0_i32_0 : i32, i32
  }
  func.func @transform_7(%arg0: i32, %arg1: i32) -> (i32, i32) {
    %c0_i32 = arith.constant 0 : i32
    %c0_i32_0 = arith.constant 0 : i32
    return %arg1, %c0_i32 : i32, i32
  }
  func.func @transform_8(%arg0: i32, %arg1: i32) -> (i32, i32, i32) {
    %c0_i32 = arith.constant 0 : i32
    %c0_i32_0 = arith.constant 0 : i32
    return %arg0, %arg1, %c0_i32 : i32, i32, i32
  }
}

</mosaic_0001>

<llo_original>
// kernel: tpu_custom_call.1
$region0: #{tpu_custom_call.1}
  #allocation0 [shape = 'u32[]', space=smem, size = 0x4, offset = 0x4, fixed_abs, tag = 'smem constant byte address 0x4 - core index']
  #allocation1 [shape = 'u32[72,128]{1,0:T(1,128)}', space=vmem, size = 0x9000, scoped, tag = 'internal scratch']
  #allocation2 [shape = 'bf16[8,32]{1,0:T(8,128)(2,1)}', space=vmem, size = 0x800, scoped, tag = 'scratch operand']
  #allocation3 [shape = 'bf16[8,32]{1,0:T(8,128)(2,1)}', space=vmem, size = 0x800, scoped, tag = 'scratch operand']
  %s0 = inlined_call_operand.hbm [shape: bf16[2,8,32], index: 0, kind: input, shape index: {}]
  %s1 = inlined_call_operand.hbm [shape: bf16[2,8,32], index: 1, kind: input, shape index: {}]
  %s2 = inlined_call_operand.hbm [shape: bf16[32,32], index: 2, kind: input, shape index: {}]
  %s3 = inlined_call_operand.hbm [shape: bf16[32,32], index: 3, kind: input, shape index: {}]
  %s4 = inlined_call_operand.hbm [shape: bf16[32,32], index: 4, kind: input, shape index: {}]
  %s5 = inlined_call_operand.hbm [shape: bf16[32,32], index: 5, kind: input, shape index: {}]
  %s6 = inlined_call_operand.vmem [shape: f32[1,32], index: 6, kind: input, shape index: {}]
  %s7 = inlined_call_operand.hbm [shape: f32[8,8], index: 7, kind: input, shape index: {}]
  %s8 = inlined_call_operand.hbm [shape: f32[2,8,32], index: 8, kind: output, shape index: {}]
  %s9 = sld [smem:[#allocation0]]
  $region97: #{tpu_custom_call.1} parent=0
    _
  %s11 = ssub.s32 1, %s9
  %s12 = scalar_select 0, %s11, %s9
  $region1: #{tpu_custom_call.1} parent=0
    #allocation4 [shape = 'u8[4096]{0}', space=vmem, size = 0x1000, scoped, tag = 'input window, operand 0']
    #allocation5 [shape = 's32[2]{0}', space=sflag, size = 0x8, scoped, tag = 'scoped memory for tpu_custom_call.1']
    #allocation6 [shape = 's32[2]{0}', space=sflag, size = 0x8, scoped, tag = 'scoped memory for tpu_custom_call.1']
    #allocation7 [shape = 'u8[4096]{0}', space=vmem, size = 0x1000, scoped, tag = 'input window, operand 1']
    #allocation8 [shape = 's32[2]{0}', space=sflag, size = 0x8, scoped, tag = 'scoped memory for tpu_custom_call.1']
    #allocation9 [shape = 'u8[8192]{0}', space=vmem, size = 0x2000, scoped, tag = 'input window, operand 2, single buffered']
    #allocation10 [shape = 'u8[8192]{0}', space=vmem, size = 0x2000, scoped, tag = 'input window, operand 3, single buffered']
    #allocation11 [shape = 's32[1]{0}', space=sflag, size = 0x4, scoped, tag = 'scoped memory for tpu_custom_call.1']
    #allocation12 [shape = 'u8[8192]{0}', space=vmem, size = 0x2000, scoped, tag = 'input window, operand 4, single buffered']
    #allocation13 [shape = 'u8[8192]{0}', space=vmem, size = 0x2000, scoped, tag = 'input window, operand 5, single buffered']
    #allocation14 [shape = 's32[1]{0}', space=sflag, size = 0x4, scoped, tag = 'scoped memory for tpu_custom_call.1']
    #allocation15 [shape = 'u8[4096]{0}', space=vmem, size = 0x1000, scoped, tag = 'input window, operand 7, single buffered']
    #allocation16 [shape = 'u8[8192]{0}', space=vmem, size = 0x2000, scoped, tag = 'output window, operand 0']
    %13 = vsyncpa [#allocation5], 0
    %s14 = scalar_lea.sflag [#allocation5], 1
    %15 = vsyncpa %s14, 0
    %16 = vsyncpa [#allocation8], 0
    %s17 = scalar_lea.sflag [#allocation8], 1
    %18 = vsyncpa %s17, 0
    %19 = vsyncpa [#allocation11], 0
    %20 = vsyncpa [#allocation14], 0
    %21 = vsyncpa [#allocation6], 0
    %s22 = scalar_lea.sflag [#allocation6], 1
    %23 = vsyncpa %s22, 0
    loop: start=0, step=1, limit=4
    $region2: #{tpu_custom_call.1} parent=1 // loop_pre_header
      _
    $region3: #{tpu_custom_call.1} parent=1 // loop_header
      %s25 = sphi 0, %s29
      %p26 = scmp.ge.s32.totalorder %s25, 4
      %s32 = sphi 0, %s44
      %s33 = sphi 0, %s40
      %s34 = sphi 0, %s32
      %s35 = sphi 0, %s33
      %s36 = sphi 0, %s34
      %s37 = sphi 0, %s35
      %s49 = sphi 0, %s51
      %s52 = sphi 0, %s49
      %s53 = sphi 0, %s52
      %s69 = sphi 0, %s53
      %s75 = sphi 0, %s77
      %s78 = sphi 0, %s75
      %s79 = sphi 0, %s78
      %s95 = sphi 0, %s79
      %s99 = sphi 0, %s99
      %s101 = sphi 0, %s99
      %s102 = sphi 0, %s101
      %s116 = sphi 0, %s102
      %s120 = sphi 0, %s120
      %s122 = sphi 0, %s120
      %s123 = sphi 0, %s122
      %s137 = sphi 0, %s123
      %s141 = sphi 0, %s141
      %s143 = sphi 0, %s141
      %s144 = sphi 0, %s143
      %s158 = sphi 0, %s144
      %s162 = sphi 0, %s162
      %s164 = sphi 0, %s162
      %s165 = sphi 0, %s164
      %s179 = sphi 0, %s165
      %s183 = sphi 0, %s183
      %s185 = sphi 0, %s183
      %s186 = sphi 0, %s185
      %s200 = sphi 0, %s186
      %s206 = sphi 0, %s208
      %s209 = sphi 0, %s206
      %s210 = sphi 0, %s209
      %s226 = sphi 0, %s210
      %s234 = sphi 0, %s236
      %s237 = sphi 0, %s234
      %s238 = sphi 0, %s237
      %s254 = sphi 0, %s238
    $region4: #{tpu_custom_call.1} parent=1 // loop_header_branch
      %28 = sbr.rel (%p26) target = $region8
    $region5: #{tpu_custom_call.1} parent=1 // loop_body
      %s30 = ssub.s32 %s25, 1
      %s31 = ssub.s32 %s25, 2
      %s38 = sadd.s32 1, %s33
      %p39 = scmp.ge.s32.totalorder %s38, 1
      %s40 = scalar_select %p39, 0, %s38
      %s41 = sadd.s32 1, %s32
      %s42 = scalar_select %p39, %s41, %s32
      %p43 = scmp.ge.s32.totalorder %s42, 2
      %s44 = scalar_select %p43, 0, %s42
      %s45 = ssub.s32 %s32, %s44
      %s46 = ssub.s32 %s33, %s40
      %s47 = sor.u32 %s45, %s46
      %p48 = scmp.eq.s32.totalorder %s47, 0
      %s50 = sadd.s32 %s49, 1
      %s51 = scalar_select %p48, %s49, %s50
      %p54 = pneg %p48
      %p55 = scmp.eq.s32.totalorder %s25, 1
      %p56 = por %p54, %p55
      %p57 = scmp.ne.s32.totalorder %s49, %s52
      %p58 = scmp.eq.s32.totalorder %s25, 0
      %p59 = por %p57, %p58
      %p60 = scmp.ne.s32.totalorder %s49, %s52
      %p61 = scmp.eq.s32.totalorder %s30, 1
      %p62 = por %p60, %p61
      %p63 = scmp.ne.s32.totalorder %s52, %s53
      %p64 = scmp.eq.s32.totalorder %s30, 0
      %p65 = por %p63, %p64
      %p66 = scmp.ne.s32.totalorder %s52, %s53
      %p67 = scmp.eq.s32.totalorder %s31, 1
      %p68 = por %p66, %p67
      %p70 = scmp.ne.s32.totalorder %s53, %s69
      %p71 = scmp.eq.s32.totalorder %s31, 0
      %p72 = por %p70, %p71
      %s73 = ssub.s32 %s32, %s44
      %p74 = scmp.eq.s32.totalorder %s73, 0
      %s76 = sadd.s32 %s75, 1
      %s77 = scalar_select %p74, %s75, %s76
      %p80 = pneg %p74
      %p81 = scmp.eq.s32.totalorder %s25, 1
      %p82 = por %p80, %p81
      %p83 = scmp.ne.s32.totalorder %s75, %s78
      %p84 = scmp.eq.s32.totalorder %s25, 0
      %p85 = por %p83, %p84
      %p86 = scmp.ne.s32.totalorder %s75, %s78
      %p87 = scmp.eq.s32.totalorder %s30, 1
      %p88 = por %p86, %p87
      %p89 = scmp.ne.s32.totalorder %s78, %s79
      %p90 = scmp.eq.s32.totalorder %s30, 0
      %p91 = por %p89, %p90
      %p92 = scmp.ne.s32.totalorder %s78, %s79
      %p93 = scmp.eq.s32.totalorder %s31, 1
      %p94 = por %p92, %p93
      %p96 = scmp.ne.s32.totalorder %s79, %s95
      %p97 = scmp.eq.s32.totalorder %s31, 0
      %p98 = por %p96, %p97
      %s100 = sadd.s32 %s99, 1
      %p103 = scmp.eq.s32.totalorder %s25, 1
      %p104 = scmp.ne.s32.totalorder %s99, %s101
      %p105 = scmp.eq.s32.totalorder %s25, 0
      %p106 = por %p104, %p105
      %p107 = scmp.ne.s32.totalorder %s99, %s101
      %p108 = scmp.eq.s32.totalorder %s30, 1
      %p109 = por %p107, %p108
      %p110 = scmp.ne.s32.totalorder %s101, %s102
      %p111 = scmp.eq.s32.totalorder %s30, 0
      %p112 = por %p110, %p111
      %p113 = scmp.ne.s32.totalorder %s101, %s102
      %p114 = scmp.eq.s32.totalorder %s31, 1
      %p115 = por %p113, %p114
      %p117 = scmp.ne.s32.totalorder %s102, %s116
      %p118 = scmp.eq.s32.totalorder %s31, 0
      %p119 = por %p117, %p118
      %s121 = sadd.s32 %s120, 1
      %p124 = scmp.eq.s32.totalorder %s25, 1
      %p125 = scmp.ne.s32.totalorder %s120, %s122
      %p126 = scmp.eq.s32.totalorder %s25, 0
      %p127 = por %p125, %p126
      %p128 = scmp.ne.s32.totalorder %s120, %s122
      %p129 = scmp.eq.s32.totalorder %s30, 1
      %p130 = por %p128, %p129
      %p131 = scmp.ne.s32.totalorder %s122, %s123
      %p132 = scmp.eq.s32.totalorder %s30, 0
      %p133 = por %p131, %p132
      %p134 = scmp.ne.s32.totalorder %s122, %s123
      %p135 = scmp.eq.s32.totalorder %s31, 1
      %p136 = por %p134, %p135
      %p138 = scmp.ne.s32.totalorder %s123, %s137
      %p139 = scmp.eq.s32.totalorder %s31, 0
      %p140 = por %p138, %p139
      %s142 = sadd.s32 %s141, 1
      %p145 = scmp.eq.s32.totalorder %s25, 1
      %p146 = scmp.ne.s32.totalorder %s141, %s143
      %p147 = scmp.eq.s32.totalorder %s25, 0
      %p148 = por %p146, %p147
      %p149 = scmp.ne.s32.totalorder %s141, %s143
      %p150 = scmp.eq.s32.totalorder %s30, 1
      %p151 = por %p149, %p150
      %p152 = scmp.ne.s32.totalorder %s143, %s144
      %p153 = scmp.eq.s32.totalorder %s30, 0
      %p154 = por %p152, %p153
      %p155 = scmp.ne.s32.totalorder %s143, %s144
      %p156 = scmp.eq.s32.totalorder %s31, 1
      %p157 = por %p155, %p156
      %p159 = scmp.ne.s32.totalorder %s144, %s158
      %p160 = scmp.eq.s32.totalorder %s31, 0
      %p161 = por %p159, %p160
      %s163 = sadd.s32 %s162, 1
      %p166 = scmp.eq.s32.totalorder %s25, 1
      %p167 = scmp.ne.s32.totalorder %s162, %s164
      %p168 = scmp.eq.s32.totalorder %s25, 0
      %p169 = por %p167, %p168
      %p170 = scmp.ne.s32.totalorder %s162, %s164
      %p171 = scmp.eq.s32.totalorder %s30, 1
      %p172 = por %p170, %p171
      %p173 = scmp.ne.s32.totalorder %s164, %s165
      %p174 = scmp.eq.s32.totalorder %s30, 0
      %p175 = por %p173, %p174
      %p176 = scmp.ne.s32.totalorder %s164, %s165
      %p177 = scmp.eq.s32.totalorder %s31, 1
      %p178 = por %p176, %p177
      %p180 = scmp.ne.s32.totalorder %s165, %s179
      %p181 = scmp.eq.s32.totalorder %s31, 0
      %p182 = por %p180, %p181
      %s184 = sadd.s32 %s183, 1
      %p187 = scmp.eq.s32.totalorder %s25, 1
      %p188 = scmp.ne.s32.totalorder %s183, %s185
      %p189 = scmp.eq.s32.totalorder %s25, 0
      %p190 = por %p188, %p189
      %p191 = scmp.ne.s32.totalorder %s183, %s185
      %p192 = scmp.eq.s32.totalorder %s30, 1
      %p193 = por %p191, %p192
      %p194 = scmp.ne.s32.totalorder %s185, %s186
      %p195 = scmp.eq.s32.totalorder %s30, 0
      %p196 = por %p194, %p195
      %p197 = scmp.ne.s32.totalorder %s185, %s186
      %p198 = scmp.eq.s32.totalorder %s31, 1
      %p199 = por %p197, %p198
      %p201 = scmp.ne.s32.totalorder %s186, %s200
      %p202 = scmp.eq.s32.totalorder %s31, 0
      %p203 = por %p201, %p202
      %s204 = ssub.s32 %s33, %s40
      %p205 = scmp.eq.s32.totalorder %s204, 0
      %s207 = sadd.s32 %s206, 1
      %s208 = scalar_select %p205, %s206, %s207
      %p211 = pneg %p205
      %p212 = scmp.eq.s32.totalorder %s25, 1
      %p213 = por %p211, %p212
      %p214 = scmp.ne.s32.totalorder %s206, %s209
      %p215 = scmp.eq.s32.totalorder %s25, 0
      %p216 = por %p214, %p215
      %p217 = scmp.ne.s32.totalorder %s206, %s209
      %p218 = scmp.eq.s32.totalorder %s30, 1
      %p219 = por %p217, %p218
      %p220 = scmp.ne.s32.totalorder %s209, %s210
      %p221 = scmp.eq.s32.totalorder %s30, 0
      %p222 = por %p220, %p221
      %p223 = scmp.ne.s32.totalorder %s209, %s210
      %p224 = scmp.eq.s32.totalorder %s31, 1
      %p225 = por %p223, %p224
      %p227 = scmp.ne.s32.totalorder %s210, %s226
      %p228 = scmp.eq.s32.totalorder %s31, 0
      %p229 = por %p227, %p228
      %s230 = ssub.s32 %s32, %s44
      %s231 = ssub.s32 %s33, %s40
      %s232 = sor.u32 %s230, %s231
      %p233 = scmp.eq.s32.totalorder %s232, 0
      %s235 = sadd.s32 %s234, 1
      %s236 = scalar_select %p233, %s234, %s235
      %p239 = pneg %p233
      %p240 = scmp.eq.s32.totalorder %s25, 1
      %p241 = por %p239, %p240
      %p242 = scmp.ne.s32.totalorder %s234, %s237
      %p243 = scmp.eq.s32.totalorder %s25, 0
      %p244 = por %p242, %p243
      %p245 = scmp.ne.s32.totalorder %s234, %s237
      %p246 = scmp.eq.s32.totalorder %s30, 1
      %p247 = por %p245, %p246
      %p248 = scmp.ne.s32.totalorder %s237, %s238
      %p249 = scmp.eq.s32.totalorder %s30, 0
      %p250 = por %p248, %p249
      %p251 = scmp.ne.s32.totalorder %s237, %s238
      %p252 = scmp.eq.s32.totalorder %s31, 1
      %p253 = por %p251, %p252
      %p255 = scmp.ne.s32.totalorder %s238, %s254
      %p256 = scmp.eq.s32.totalorder %s31, 0
      %p257 = por %p255, %p256
      %p258 = scmp.le.s32.totalorder 1, %s25
      %p259 = scmp.lt.s32.totalorder %s25, 3
      %p260 = pnand %p258, %p259
      %p261 = pneg %p260
      // Predicated region
      $region9: #{tpu_custom_call.1} parent=5 // pred_check
        _
      $region10: #{tpu_custom_call.1} parent=5 // pred_check_branch
        %263 = sbr.rel (%p260) target = $region12
      $region11: #{tpu_custom_call.1} parent=5 // pred_region
        %s264 = ssub.s32 %s25, 1
        // Predicated region
        $region13: #{tpu_custom_call.1} parent=11 // pred_check
          %p265 = pneg %p112
        $region14: #{tpu_custom_call.1} parent=11 // pred_check_branch
          %267 = sbr.rel (%p265) target = $region16
        $region15: #{tpu_custom_call.1} parent=11 // pred_region
          %269 = vsyncadd [#allocation8], 0
          %s270 = sshll.u32 %s2, 4
          %s271 = int_to_ptr.hbm [resolvable:$true] %s270
          %s272 = sshll.u32 [#allocation9], 4
          %s273 = int_to_ptr.vmem [resolvable:$true] %s272
          %278 = dma.hbm_to_vmem [thread:$0]  %s271, 256, %s273, [#allocation8], 64, 64, 4
        $region16: #{tpu_custom_call.1} parent=11 // pred_fallthru
          _
        // Predicated region
        $region17: #{tpu_custom_call.1} parent=11 // pred_check
          %p279 = pneg %p133
        $region18: #{tpu_custom_call.1} parent=11 // pred_check_branch
          %281 = sbr.rel (%p279) target = $region20
        $region19: #{tpu_custom_call.1} parent=11 // pred_region
          %283 = vsyncadd [#allocation11], 0
          %s284 = sshll.u32 %s3, 4
          %s285 = int_to_ptr.hbm [resolvable:$true] %s284
          %s286 = sshll.u32 [#allocation10], 4
          %s287 = int_to_ptr.vmem [resolvable:$true] %s286
          %292 = dma.hbm_to_vmem [thread:$0]  %s285, 256, %s287, [#allocation11], 64, 64, 4
        $region20: #{tpu_custom_call.1} parent=11 // pred_fallthru
          _
        // Predicated region
        $region21: #{tpu_custom_call.1} parent=11 // pred_check
          %p293 = pneg %p154
        $region22: #{tpu_custom_call.1} parent=11 // pred_check_branch
          %295 = sbr.rel (%p293) target = $region24
        $region23: #{tpu_custom_call.1} parent=11 // pred_region
          %297 = vsyncadd [#allocation11], 0
          %s298 = sshll.u32 %s4, 4
          %s299 = int_to_ptr.hbm [resolvable:$true] %s298
          %s300 = sshll.u32 [#allocation12], 4
          %s301 = int_to_ptr.vmem [resolvable:$true] %s300
          %306 = dma.hbm_to_vmem [thread:$0]  %s299, 256, %s301, [#allocation11], 64, 64, 4
        $region24: #{tpu_custom_call.1} parent=11 // pred_fallthru
          _
        // Predicated region
        $region25: #{tpu_custom_call.1} parent=11 // pred_check
          %p307 = pneg %p175
        $region26: #{tpu_custom_call.1} parent=11 // pred_check_branch
          %309 = sbr.rel (%p307) target = $region28
        $region27: #{tpu_custom_call.1} parent=11 // pred_region
          %311 = vsyncadd [#allocation14], 0
          %s312 = sshll.u32 %s5, 4
          %s313 = int_to_ptr.hbm [resolvable:$true] %s312
          %s314 = sshll.u32 [#allocation13], 4
          %s315 = int_to_ptr.vmem [resolvable:$true] %s314
          %320 = dma.hbm_to_vmem [thread:$0]  %s313, 256, %s315, [#allocation14], 64, 64, 4
        $region28: #{tpu_custom_call.1} parent=11 // pred_fallthru
          _
        // Predicated region
        $region29: #{tpu_custom_call.1} parent=11 // pred_check
          %p321 = pneg %p196
        $region30: #{tpu_custom_call.1} parent=11 // pred_check_branch
          %323 = sbr.rel (%p321) target = $region32
        $region31: #{tpu_custom_call.1} parent=11 // pred_region
          _
        $region32: #{tpu_custom_call.1} parent=11 // pred_fallthru
          _
        // Predicated region
        $region33: #{tpu_custom_call.1} parent=11 // pred_check
          %p324 = pneg %p222
        $region34: #{tpu_custom_call.1} parent=11 // pred_check_branch
          %326 = sbr.rel (%p324) target = $region36
        $region35: #{tpu_custom_call.1} parent=11 // pred_region
          %328 = vsyncadd [#allocation14], 0
          %s329 = smul.addr %s35, 8
          %s330 = scalar_lea.hbm %s7, %s329
          %s332 = sshll.u32 %s330, 4
          %s333 = int_to_ptr.hbm [resolvable:$true] %s332
          %s334 = sshll.u32 [#allocation15], 4
          %s335 = int_to_ptr.vmem [resolvable:$true] %s334
          %337 = dma.hbm_to_vmem [thread:$0]  %s333, 128, %s335, [#allocation14]
        $region36: #{tpu_custom_call.1} parent=11 // pred_fallthru
          _
      $region12: #{tpu_custom_call.1} parent=5 // pred_fallthru
        _
      %p338 = scmp.lt.s32.totalorder %s25, 2
      // Predicated region
      $region37: #{tpu_custom_call.1} parent=5 // pred_check
        %p339 = pneg %p338
      $region38: #{tpu_custom_call.1} parent=5 // pred_check_branch
        %341 = sbr.rel (%p339) target = $region40
      $region39: #{tpu_custom_call.1} parent=5 // pred_region
        // Predicated region
        $region41: #{tpu_custom_call.1} parent=39 // pred_check
          %p342 = pneg %p59
        $region42: #{tpu_custom_call.1} parent=39 // pred_check_branch
          %344 = sbr.rel (%p342) target = $region44
        $region43: #{tpu_custom_call.1} parent=39 // pred_region
          %s345 = sand.u32 %s49, 1
          %s346 = scalar_lea.sflag [#allocation5], %s345
          %s347 = sand.u32 %s49, 1
          %s348 = smul.addr %s347, 4
          %s349 = scalar_lea.vmem [#allocation4], %s348
          %351 = vsyncadd %s346, 0
          %s352 = sadd.s32 %s33, %s32
          %s353 = smul.addr %s352, 4
          %s354 = scalar_lea.hbm %s0, %s353
          %s356 = sshll.u32 %s354, 4
          %s357 = int_to_ptr.hbm [resolvable:$true] %s356
          %s358 = sshll.u32 %s349, 4
          %s359 = int_to_ptr.vmem [resolvable:$true] %s358
          %361 = dma.hbm_to_vmem [thread:$0]  %s357, 64, %s359, %s346
        $region44: #{tpu_custom_call.1} parent=39 // pred_fallthru
          _
        // Predicated region
        $region45: #{tpu_custom_call.1} parent=39 // pred_check
          %p362 = pneg %p85
        $region46: #{tpu_custom_call.1} parent=39 // pred_check_branch
          %364 = sbr.rel (%p362) target = $region48
        $region47: #{tpu_custom_call.1} parent=39 // pred_region
          %s365 = sand.u32 %s25, 1
          %s366 = scalar_lea.sflag [#allocation8], %s365
          %s367 = sand.u32 %s75, 1
          %s368 = smul.addr %s367, 4
          %s369 = scalar_lea.vmem [#allocation7], %s368
          %371 = vsyncadd %s366, 0
          %s372 = smul.addr %s32, 4
          %s373 = scalar_lea.hbm %s1, %s372
          %s375 = sshll.u32 %s373, 4
          %s376 = int_to_ptr.hbm [resolvable:$true] %s375
          %s377 = sshll.u32 %s369, 4
          %s378 = int_to_ptr.vmem [resolvable:$true] %s377
          %380 = dma.hbm_to_vmem [thread:$0]  %s376, 64, %s378, %s366
        $region48: #{tpu_custom_call.1} parent=39 // pred_fallthru
          _
      $region40: #{tpu_custom_call.1} parent=5 // pred_fallthru
        _
      %p381 = scmp.le.s32.totalorder 1, %s25
      %p382 = scmp.lt.s32.totalorder %s25, 3
      %p383 = pnand %p381, %p382
      %p384 = pneg %p383
      // Predicated region
      $region49: #{tpu_custom_call.1} parent=5 // pred_check
        _
      $region50: #{tpu_custom_call.1} parent=5 // pred_check_branch
        %386 = sbr.rel (%p383) target = $region52
      $region51: #{tpu_custom_call.1} parent=5 // pred_region
        %s387 = ssub.s32 %s25, 1
        %s388 = sand.u32 %s52, 1
        %s389 = scalar_lea.sflag [#allocation5], %s388
        %s390 = sand.u32 %s52, 1
        %s391 = smul.addr %s390, 4
        %s392 = scalar_lea.vmem [#allocation4], %s391
        // Predicated region
        $region53: #{tpu_custom_call.1} parent=51 // pred_check
          %p393 = pneg %p65
        $region54: #{tpu_custom_call.1} parent=51 // pred_check_branch
          %395 = sbr.rel (%p393) target = $region56
        $region55: #{tpu_custom_call.1} parent=51 // pred_region
          %397 = dma.done %s389, 64
        $region56: #{tpu_custom_call.1} parent=51 // pred_fallthru
          _
        %s398 = sand.u32 %s30, 1
        %s399 = scalar_lea.sflag [#allocation8], %s398
        %s400 = sand.u32 %s78, 1
        %s401 = smul.addr %s400, 4
        %s402 = scalar_lea.vmem [#allocation7], %s401
        // Predicated region
        $region57: #{tpu_custom_call.1} parent=51 // pred_check
          %p403 = pneg %p91
        $region58: #{tpu_custom_call.1} parent=51 // pred_check_branch
          %405 = sbr.rel (%p403) target = $region60
        $region59: #{tpu_custom_call.1} parent=51 // pred_region
          %407 = dma.done %s399, 64
        $region60: #{tpu_custom_call.1} parent=51 // pred_fallthru
          _
        // Predicated region
        $region61: #{tpu_custom_call.1} parent=51 // pred_check
          %p408 = pneg %p112
        $region62: #{tpu_custom_call.1} parent=51 // pred_check_branch
          %410 = sbr.rel (%p408) target = $region64
        $region63: #{tpu_custom_call.1} parent=51 // pred_region
          %412 = dma.done [#allocation8], 256
        $region64: #{tpu_custom_call.1} parent=51 // pred_fallthru
          _
        // Predicated region
        $region65: #{tpu_custom_call.1} parent=51 // pred_check
          %p413 = pneg %p133
        $region66: #{tpu_custom_call.1} parent=51 // pred_check_branch
          %415 = sbr.rel (%p413) target = $region68
        $region67: #{tpu_custom_call.1} parent=51 // pred_region
          %417 = dma.done [#allocation11], 256
        $region68: #{tpu_custom_call.1} parent=51 // pred_fallthru
          _
        // Predicated region
        $region69: #{tpu_custom_call.1} parent=51 // pred_check
          %p418 = pneg %p154
        $region70: #{tpu_custom_call.1} parent=51 // pred_check_branch
          %420 = sbr.rel (%p418) target = $region72
        $region71: #{tpu_custom_call.1} parent=51 // pred_region
          %422 = dma.done [#allocation11], 256
        $region72: #{tpu_custom_call.1} parent=51 // pred_fallthru
          _
        // Predicated region
        $region73: #{tpu_custom_call.1} parent=51 // pred_check
          %p423 = pneg %p175
        $region74: #{tpu_custom_call.1} parent=51 // pred_check_branch
          %425 = sbr.rel (%p423) target = $region76
        $region75: #{tpu_custom_call.1} parent=51 // pred_region
          %427 = dma.done [#allocation14], 256
        $region76: #{tpu_custom_call.1} parent=51 // pred_fallthru
          _
        // Predicated region
        $region77: #{tpu_custom_call.1} parent=51 // pred_check
          %p428 = pneg %p222
        $region78: #{tpu_custom_call.1} parent=51 // pred_check_branch
          %430 = sbr.rel (%p428) target = $region80
        $region79: #{tpu_custom_call.1} parent=51 // pred_region
          %432 = dma.done [#allocation14], 128
        $region80: #{tpu_custom_call.1} parent=51 // pred_fallthru
          _
        %s433 = sand.u32 %s52, 1
        %s434 = scalar_lea.sflag [#allocation5], %s433
        %s435 = sand.u32 %s52, 1
        %s436 = smul.addr %s435, 4
        %s437 = scalar_lea.vmem [#allocation4], %s436
        %p438 = pneg %p65
        %p439 = pneg %p62
        %s440 = sand.u32 %s30, 1
        %s441 = scalar_lea.sflag [#allocation8], %s440
        %s442 = sand.u32 %s78, 1
        %s443 = smul.addr %s442, 4
        %s444 = scalar_lea.vmem [#allocation7], %s443
        %p445 = pneg %p91
        %p446 = pneg %p88
        %p447 = pneg %p112
        %p448 = pneg %p109
        %p449 = pneg %p133
        %p450 = pneg %p130
        %p451 = pneg %p154
        %p452 = pneg %p151
        %p453 = pneg %p175
        %p454 = pneg %p172
        %p455 = pneg %p196
        %p456 = pneg %p193
        %p457 = pneg %p222
        %p458 = pneg %p219
        %p459 = pneg %p250
        %p460 = pneg %p247
        %s461 = sand.u32 %s237, 1
        %s462 = scalar_lea.sflag [#allocation6], %s461
        %s463 = sand.u32 %s237, 1
        %s464 = smul.addr %s463, 8
        %s465 = scalar_lea.vmem [#allocation16], %s464
        %p467 = scmp.eq.s32.totalorder %s35, 0
        // Predicated region
        $region81: #{tpu_custom_call.1} parent=51 // pred_check
          %p468 = pneg %p467
        $region82: #{tpu_custom_call.1} parent=51 // pred_check_branch
          %470 = sbr.rel (%p468) target = $region84
        $region83: #{tpu_custom_call.1} parent=51 // pred_region
          %v471 = vld [vmem:[%s402] sm:$0xf]
          %v472 = vld [vmem:[#allocation10] sm:$0xf]
          %v473 = vld [vmem:[#allocation10 + $0x4] sm:$0xf]
          %v474 = vld [vmem:[#allocation10 + $0x8] sm:$0xf]
          %v475 = vld [vmem:[#allocation10 + $0xc] sm:$0xf]
          %v480 = vunpack.c.l.b16 %v472
          %v481 = vunpack.c.l.b16 %v473
          %v482 = vunpack.c.l.b16 %v474
          %v483 = vunpack.c.l.b16 %v475
          %v484 = vpack.c.b16 %v481, %v480
          %v485 = vpack.c.b16 %v483, %v482
          %vm488 = vcmask 261120
          %v490 = vsel %vm488, %v471, 0
          %492 = vmatpush.bf16.msra.mxu0 0
          %493 = vmatpush.bf16.msra.mxu0 0
          %494 = vmatpush.bf16.msra.mxu0 0
          %495 = vmatpush.bf16.msra.mxu0 0
          %496 = vmatpush.bf16.msra.mxu0 0
          %497 = vmatpush.bf16.msra.mxu0 0
          %498 = vmatpush.bf16.msra.mxu0 %v485
          %499 = vmatpush.bf16.msra.mxu0 %v484
          %500 = vmatmul.bf16.gmra.mxu0 %v490
          %v501 = vpop.f32.mrf.mxu0
          %v502 = vadd.f32 0.0, %v501
          %v503 = vpop.f32.mrf.mxu0
          %504 = vdwg.mxu0
          %v505 = vpack.c.bf16 %v502, %v502
          %vm506 = vcmask 257024
          %507 = vst.msk [vmem:[#allocation2] sm:$0xf] %vm506, %v505
          %v508 = vld [vmem:[#allocation12] sm:$0xf]
          %v509 = vld [vmem:[#allocation12 + $0x4] sm:$0xf]
          %v510 = vld [vmem:[#allocation12 + $0x8] sm:$0xf]
          %v511 = vld [vmem:[#allocation12 + $0xc] sm:$0xf]
          %v516 = vunpack.c.l.b16 %v508
          %v517 = vunpack.c.l.b16 %v509
          %v518 = vunpack.c.l.b16 %v510
          %v519 = vunpack.c.l.b16 %v511
          %v520 = vpack.c.b16 %v517, %v516
          %v521 = vpack.c.b16 %v519, %v518
          %524 = vmatpush.bf16.msra.mxu0 0
          %525 = vmatpush.bf16.msra.mxu0 0
          %526 = vmatpush.bf16.msra.mxu0 0
          %527 = vmatpush.bf16.msra.mxu0 0
          %528 = vmatpush.bf16.msra.mxu0 0
          %529 = vmatpush.bf16.msra.mxu0 0
          %530 = vmatpush.bf16.msra.mxu0 %v521
          %531 = vmatpush.bf16.msra.mxu0 %v520
          %532 = vmatmul.bf16.gmra.mxu0 %v490
          %v533 = vpop.f32.mrf.mxu0
          %v534 = vadd.f32 0.0, %v533
          %v535 = vpop.f32.mrf.mxu0
          %536 = vdwg.mxu0
          %v537 = vpack.c.bf16 %v534, %v534
          %538 = vst.msk [vmem:[#allocation3] sm:$0xf] %vm506, %v537
        $region84: #{tpu_custom_call.1} parent=51 // pred_fallthru
          _
        %v539 = vld [vmem:[%s392] sm:$0xf]
        %v540 = vld [vmem:[#allocation9] sm:$0xf]
        %v541 = vld [vmem:[#allocation9 + $0x4] sm:$0xf]
        %v542 = vld [vmem:[#allocation9 + $0x8] sm:$0xf]
        %v543 = vld [vmem:[#allocation9 + $0xc] sm:$0xf]
        %v548 = vunpack.c.l.b16 %v540
        %v549 = vunpack.c.l.b16 %v541
        %v550 = vunpack.c.l.b16 %v542
        %v551 = vunpack.c.l.b16 %v543
        %v552 = vpack.c.b16 %v549, %v548
        %v553 = vpack.c.b16 %v551, %v550
        %vm556 = vcmask 261120
        %v558 = vsel %vm556, %v539, 0
        %560 = vmatpush.bf16.msra.mxu0 0
        %561 = vmatpush.bf16.msra.mxu0 0
        %562 = vmatpush.bf16.msra.mxu0 0
        %563 = vmatpush.bf16.msra.mxu0 0
        %564 = vmatpush.bf16.msra.mxu0 0
        %565 = vmatpush.bf16.msra.mxu0 0
        %566 = vmatpush.bf16.msra.mxu0 %v553
        %567 = vmatpush.bf16.msra.mxu0 %v552
        %568 = vmatmul.bf16.gmra.mxu0 %v558
        %v569 = vpop.f32.mrf.mxu0
        %v570 = vadd.f32 0.0, %v569
        %v571 = vpop.f32.mrf.mxu0
        %572 = vdwg.mxu0
        %v573 = vmul.f32 %v570, 0.5
        %v574 = vpack.c.bf16 %v573, %v573
        %v575 = vld [vmem:[#allocation15] sm:$0xff]
        %v576 = vld [vmem:[%s6] sm:$0x1]
        %v578 = vperm.slane %v576, 0
        %v580 = vld [vmem:[#allocation2] sm:$0xf]
        %vm581 = vcmask 31744
        %v583 = vsel %vm581, %v574, 0
        %v586 = vsel %vm581, %v580, 0
        %588 = vmatpush.bf16.xpose.msra.mxu0 0
        %589 = vmatpush.bf16.xpose.msra.mxu0 0
        %590 = vmatpush.bf16.xpose.msra.mxu0 0
        %591 = vmatpush.bf16.xpose.msra.mxu0 0
        %592 = vmatpush.bf16.xpose.msra.mxu0 0
        %593 = vmatpush.bf16.xpose.msra.mxu0 0
        %594 = vmatpush.bf16.xpose.msra.mxu0 0
        %595 = vmatpush.bf16.xpose.msra.mxu0 %v586
        %596 = vmatmul.bf16.gmra.mxu0 %v583
        %v597 = vpop.f32.mrf.mxu0
        %v598 = vadd.f32 %v575, %v597
        %v599 = vpop.f32.mrf.mxu0
        %600 = vdwg.mxu0
        %vm601 = vcmask 64512
        %v602 = vsel %vm601, %v598, -inf
        %603 = vmax.xlane.f32.xlu0 %v602
        %v604 = vpop.xlane.xlu0 %603
        %v605 = vsub.f32 %v598, %v604
        %v606 = vmul.f32 %v605, 1.442695
        %v607 = vpow.pop %v606
        %v608 = vsel %vm601, %v607, 0.0
        %609 = vadd.xlane.f32.xlu0 %v608
        %v610 = vpop.xlane.xlu0 %609
        %v611 = vrcp.pop %v610
        %v612 = vmul.f32 %v607, %v611
        %v613 = vpack.c.bf16 %v612, %v612
        %v614 = vld [vmem:[#allocation3] sm:$0xf]
        %v616 = vsel %vm601, %v613, 0
        %vm618 = vcmask 1043456
        %v620 = vsel %vm618, %v614, 0
        %622 = vmatpush.bf16.msra.mxu0 0
        %623 = vmatpush.bf16.msra.mxu0 0
        %624 = vmatpush.bf16.msra.mxu0 0
        %625 = vmatpush.bf16.msra.mxu0 0
        %626 = vmatpush.bf16.msra.mxu0 0
        %627 = vmatpush.bf16.msra.mxu0 0
        %628 = vmatpush.bf16.msra.mxu0 0
        %629 = vmatpush.bf16.msra.mxu0 %v620
        %630 = vmatmul.bf16.gmra.mxu0 %v616
        %v631 = vpop.f32.mrf.mxu0
        %v632 = vadd.f32 0.0, %v631
        %v633 = vpop.f32.mrf.mxu0
        %634 = vdwg.mxu0
        %v635 = vpack.c.bf16 %v632, %v632
        %v636 = vld [vmem:[#allocation13] sm:$0x3]
        %v638 = vsel %vm581, %v635, 0
        %vm640 = vcmask 1041408
        %v642 = vsel %vm640, %v636, 0
        %644 = vmatpush.bf16.msra.mxu0 0
        %645 = vmatpush.bf16.msra.mxu0 0
        %646 = vmatpush.bf16.msra.mxu0 0
        %647 = vmatpush.bf16.msra.mxu0 0
        %648 = vmatpush.bf16.msra.mxu0 0
        %649 = vmatpush.bf16.msra.mxu0 0
        %650 = vmatpush.bf16.msra.mxu0 0
        %651 = vmatpush.bf16.msra.mxu0 %v642
        %652 = vmatmul.bf16.gmra.mxu0 %v638
        %v653 = vpop.f32.mrf.mxu0
        %v654 = vadd.f32 0.0, %v653
        %v655 = vpop.f32.mrf.mxu0
        %656 = vdwg.mxu0
        %v657 = vadd.f32 %v578, %v654
        %v659 = vunpack.c.l.b16 %v574
        %v660 = vpack.c.b16 %v659, %v659
        %661 = vrot.lane.b32.xlu0 %v660, 124
        %v662 = vpop.permute.xlu0 %661
        %v664 = vunpack.c.l.b16 %v580
        %v665 = vpack.c.b16 %v664, %v664
        %666 = vrot.lane.b32.xlu0 %v665, 124
        %v667 = vpop.permute.xlu0 %666
        %v669 = vsel %vm581, %v662, 0
        %v672 = vsel %vm581, %v667, 0
        %674 = vmatpush.bf16.xpose.msra.mxu0 0
        %675 = vmatpush.bf16.xpose.msra.mxu0 0
        %676 = vmatpush.bf16.xpose.msra.mxu0 0
        %677 = vmatpush.bf16.xpose.msra.mxu0 0
        %678 = vmatpush.bf16.xpose.msra.mxu0 0
        %679 = vmatpush.bf16.xpose.msra.mxu0 0
        %680 = vmatpush.bf16.xpose.msra.mxu0 0
        %681 = vmatpush.bf16.xpose.msra.mxu0 %v672
        %682 = vmatmul.bf16.gmra.mxu0 %v669
        %v683 = vpop.f32.mrf.mxu0
        %v684 = vadd.f32 %v575, %v683
        %v685 = vpop.f32.mrf.mxu0
        %686 = vdwg.mxu0
        %v687 = vsel %vm601, %v684, -inf
        %688 = vmax.xlane.f32.xlu0 %v687
        %v689 = vpop.xlane.xlu0 %688
        %v690 = vsub.f32 %v684, %v689
        %v691 = vmul.f32 %v690, 1.442695
        %v692 = vpow.pop %v691
        %v693 = vsel %vm601, %v692, 0.0
        %694 = vadd.xlane.f32.xlu0 %v693
        %v695 = vpop.xlane.xlu0 %694
        %v696 = vrcp.pop %v695
        %v697 = vmul.f32 %v692, %v696
        %v698 = vpack.c.bf16 %v697, %v697
        %v700 = vunpack.c.l.b16 %v614
        %v701 = vpack.c.b16 %v700, %v700
        %702 = vrot.lane.b32.xlu0 %v701, 124
        %v703 = vpop.permute.xlu0 %702
        %v705 = vsel %vm601, %v698, 0
        %v708 = vsel %vm618, %v703, 0
        %710 = vmatpush.bf16.msra.mxu0 0
        %711 = vmatpush.bf16.msra.mxu0 0
        %712 = vmatpush.bf16.msra.mxu0 0
        %713 = vmatpush.bf16.msra.mxu0 0
        %714 = vmatpush.bf16.msra.mxu0 0
        %715 = vmatpush.bf16.msra.mxu0 0
        %716 = vmatpush.bf16.msra.mxu0 0
        %717 = vmatpush.bf16.msra.mxu0 %v708
        %718 = vmatmul.bf16.gmra.mxu0 %v705
        %v719 = vpop.f32.mrf.mxu0
        %v720 = vadd.f32 0.0, %v719
        %v721 = vpop.f32.mrf.mxu0
        %722 = vdwg.mxu0
        %v723 = vpack.c.bf16 %v720, %v720
        %v724 = vld [vmem:[#allocation13] sm:$0xc]
        %v726 = vunpack.c.l.b16 %v724
        %v727 = vpack.c.b16 %v726, %v726
        %v728 = vrot.slane %v727, 2
        %v730 = vsel %vm581, %v723, 0
        %v733 = vsel %vm640, %v728, 0
        %735 = vmatpush.bf16.msra.mxu0 0
        %736 = vmatpush.bf16.msra.mxu0 0
        %737 = vmatpush.bf16.msra.mxu0 0
        %738 = vmatpush.bf16.msra.mxu0 0
        %739 = vmatpush.bf16.msra.mxu0 0
        %740 = vmatpush.bf16.msra.mxu0 0
        %741 = vmatpush.bf16.msra.mxu0 0
        %742 = vmatpush.bf16.msra.mxu0 %v733
        %743 = vmatmul.bf16.gmra.mxu0 %v730
        %v744 = vpop.f32.mrf.mxu0
        %v745 = vadd.f32 0.0, %v744
        %v746 = vpop.f32.mrf.mxu0
        %747 = vdwg.mxu0
        %v748 = vadd.f32 %v657, %v745
        %749 = vrot.lane.b32.xlu0 %v660, 120
        %v750 = vpop.permute.xlu0 %749
        %751 = vrot.lane.b32.xlu0 %v665, 120
        %v752 = vpop.permute.xlu0 %751
        %v754 = vsel %vm581, %v750, 0
        %v757 = vsel %vm581, %v752, 0
        %759 = vmatpush.bf16.xpose.msra.mxu0 0
        %760 = vmatpush.bf16.xpose.msra.mxu0 0
        %761 = vmatpush.bf16.xpose.msra.mxu0 0
        %762 = vmatpush.bf16.xpose.msra.mxu0 0
        %763 = vmatpush.bf16.xpose.msra.mxu0 0
        %764 = vmatpush.bf16.xpose.msra.mxu0 0
        %765 = vmatpush.bf16.xpose.msra.mxu0 0
        %766 = vmatpush.bf16.xpose.msra.mxu0 %v757
        %767 = vmatmul.bf16.gmra.mxu0 %v754
        %v768 = vpop.f32.mrf.mxu0
        %v769 = vadd.f32 %v575, %v768
        %v770 = vpop.f32.mrf.mxu0
        %771 = vdwg.mxu0
        %v772 = vsel %vm601, %v769, -inf
        %773 = vmax.xlane.f32.xlu0 %v772
        %v774 = vpop.xlane.xlu0 %773
        %v775 = vsub.f32 %v769, %v774
        %v776 = vmul.f32 %v775, 1.442695
        %v777 = vpow.pop %v776
        %v778 = vsel %vm601, %v777, 0.0
        %779 = vadd.xlane.f32.xlu0 %v778
        %v780 = vpop.xlane.xlu0 %779
        %v781 = vrcp.pop %v780
        %v782 = vmul.f32 %v777, %v781
        %v783 = vpack.c.bf16 %v782, %v782
        %784 = vrot.lane.b32.xlu0 %v701, 120
        %v785 = vpop.permute.xlu0 %784
        %v787 = vsel %vm601, %v783, 0
        %v790 = vsel %vm618, %v785, 0
        %792 = vmatpush.bf16.msra.mxu0 0
        %793 = vmatpush.bf16.msra.mxu0 0
        %794 = vmatpush.bf16.msra.mxu0 0
        %795 = vmatpush.bf16.msra.mxu0 0
        %796 = vmatpush.bf16.msra.mxu0 0
        %797 = vmatpush.bf16.msra.mxu0 0
        %798 = vmatpush.bf16.msra.mxu0 0
        %799 = vmatpush.bf16.msra.mxu0 %v790
        %800 = vmatmul.bf16.gmra.mxu0 %v787
        %v801 = vpop.f32.mrf.mxu0
        %v802 = vadd.f32 0.0, %v801
        %v803 = vpop.f32.mrf.mxu0
        %804 = vdwg.mxu0
        %v805 = vpack.c.bf16 %v802, %v802
        %v806 = vld [vmem:[#allocation13 + $0x4] sm:$0x3]
        %v808 = vsel %vm581, %v805, 0
        %v811 = vsel %vm640, %v806, 0
        %813 = vmatpush.bf16.msra.mxu0 0
        %814 = vmatpush.bf16.msra.mxu0 0
        %815 = vmatpush.bf16.msra.mxu0 0
        %816 = vmatpush.bf16.msra.mxu0 0
        %817 = vmatpush.bf16.msra.mxu0 0
        %818 = vmatpush.bf16.msra.mxu0 0
        %819 = vmatpush.bf16.msra.mxu0 0
        %820 = vmatpush.bf16.msra.mxu0 %v811
        %821 = vmatmul.bf16.gmra.mxu0 %v808
        %v822 = vpop.f32.mrf.mxu0
        %v823 = vadd.f32 0.0, %v822
        %v824 = vpop.f32.mrf.mxu0
        %825 = vdwg.mxu0
        %v826 = vadd.f32 %v748, %v823
        %827 = vrot.lane.b32.xlu0 %v660, 116
        %v828 = vpop.permute.xlu0 %827
        %829 = vrot.lane.b32.xlu0 %v665, 116
        %v830 = vpop.permute.xlu0 %829
        %v832 = vsel %vm581, %v828, 0
        %v835 = vsel %vm581, %v830, 0
        %837 = vmatpush.bf16.xpose.msra.mxu0 0
        %838 = vmatpush.bf16.xpose.msra.mxu0 0
        %839 = vmatpush.bf16.xpose.msra.mxu0 0
        %840 = vmatpush.bf16.xpose.msra.mxu0 0
        %841 = vmatpush.bf16.xpose.msra.mxu0 0
        %842 = vmatpush.bf16.xpose.msra.mxu0 0
        %843 = vmatpush.bf16.xpose.msra.mxu0 0
        %844 = vmatpush.bf16.xpose.msra.mxu0 %v835
        %845 = vmatmul.bf16.gmra.mxu0 %v832
        %v846 = vpop.f32.mrf.mxu0
        %v847 = vadd.f32 %v575, %v846
        %v848 = vpop.f32.mrf.mxu0
        %849 = vdwg.mxu0
        %v850 = vsel %vm601, %v847, -inf
        %851 = vmax.xlane.f32.xlu0 %v850
        %v852 = vpop.xlane.xlu0 %851
        %v853 = vsub.f32 %v847, %v852
        %v854 = vmul.f32 %v853, 1.442695
        %v855 = vpow.pop %v854
        %v856 = vsel %vm601, %v855, 0.0
        %857 = vadd.xlane.f32.xlu0 %v856
        %v858 = vpop.xlane.xlu0 %857
        %v859 = vrcp.pop %v858
        %v860 = vmul.f32 %v855, %v859
        %v861 = vpack.c.bf16 %v860, %v860
        %862 = vrot.lane.b32.xlu0 %v701, 116
        %v863 = vpop.permute.xlu0 %862
        %v865 = vsel %vm601, %v861, 0
        %v868 = vsel %vm618, %v863, 0
        %870 = vmatpush.bf16.msra.mxu0 0
        %871 = vmatpush.bf16.msra.mxu0 0
        %872 = vmatpush.bf16.msra.mxu0 0
        %873 = vmatpush.bf16.msra.mxu0 0
        %874 = vmatpush.bf16.msra.mxu0 0
        %875 = vmatpush.bf16.msra.mxu0 0
        %876 = vmatpush.bf16.msra.mxu0 0
        %877 = vmatpush.bf16.msra.mxu0 %v868
        %878 = vmatmul.bf16.gmra.mxu0 %v865
        %v879 = vpop.f32.mrf.mxu0
        %v880 = vadd.f32 0.0, %v879
        %v881 = vpop.f32.mrf.mxu0
        %882 = vdwg.mxu0
        %v883 = vpack.c.bf16 %v880, %v880
        %v884 = vld [vmem:[#allocation13 + $0x4] sm:$0xc]
        %v886 = vunpack.c.l.b16 %v884
        %v887 = vpack.c.b16 %v886, %v886
        %v888 = vrot.slane %v887, 2
        %v890 = vsel %vm581, %v883, 0
        %v893 = vsel %vm640, %v888, 0
        %895 = vmatpush.bf16.msra.mxu0 0
        %896 = vmatpush.bf16.msra.mxu0 0
        %897 = vmatpush.bf16.msra.mxu0 0
        %898 = vmatpush.bf16.msra.mxu0 0
        %899 = vmatpush.bf16.msra.mxu0 0
        %900 = vmatpush.bf16.msra.mxu0 0
        %901 = vmatpush.bf16.msra.mxu0 0
        %902 = vmatpush.bf16.msra.mxu0 %v893
        %903 = vmatmul.bf16.gmra.mxu0 %v890
        %v904 = vpop.f32.mrf.mxu0
        %v905 = vadd.f32 0.0, %v904
        %v906 = vpop.f32.mrf.mxu0
        %907 = vdwg.mxu0
        %v908 = vadd.f32 %v826, %v905
        %909 = vrot.lane.b32.xlu0 %v660, 112
        %v910 = vpop.permute.xlu0 %909
        %911 = vrot.lane.b32.xlu0 %v665, 112
        %v912 = vpop.permute.xlu0 %911
        %v914 = vsel %vm581, %v910, 0
        %v917 = vsel %vm581, %v912, 0
        %919 = vmatpush.bf16.xpose.msra.mxu0 0
        %920 = vmatpush.bf16.xpose.msra.mxu0 0
        %921 = vmatpush.bf16.xpose.msra.mxu0 0
        %922 = vmatpush.bf16.xpose.msra.mxu0 0
        %923 = vmatpush.bf16.xpose.msra.mxu0 0
        %924 = vmatpush.bf16.xpose.msra.mxu0 0
        %925 = vmatpush.bf16.xpose.msra.mxu0 0
        %926 = vmatpush.bf16.xpose.msra.mxu0 %v917
        %927 = vmatmul.bf16.gmra.mxu0 %v914
        %v928 = vpop.f32.mrf.mxu0
        %v929 = vadd.f32 %v575, %v928
        %v930 = vpop.f32.mrf.mxu0
        %931 = vdwg.mxu0
        %v932 = vsel %vm601, %v929, -inf
        %933 = vmax.xlane.f32.xlu0 %v932
        %v934 = vpop.xlane.xlu0 %933
        %v935 = vsub.f32 %v929, %v934
        %v936 = vmul.f32 %v935, 1.442695
        %v937 = vpow.pop %v936
        %v938 = vsel %vm601, %v937, 0.0
        %939 = vadd.xlane.f32.xlu0 %v938
        %v940 = vpop.xlane.xlu0 %939
        %v941 = vrcp.pop %v940
        %v942 = vmul.f32 %v937, %v941
        %v943 = vpack.c.bf16 %v942, %v942
        %944 = vrot.lane.b32.xlu0 %v701, 112
        %v945 = vpop.permute.xlu0 %944
        %v947 = vsel %vm601, %v943, 0
        %v950 = vsel %vm618, %v945, 0
        %952 = vmatpush.bf16.msra.mxu0 0
        %953 = vmatpush.bf16.msra.mxu0 0
        %954 = vmatpush.bf16.msra.mxu0 0
        %955 = vmatpush.bf16.msra.mxu0 0
        %956 = vmatpush.bf16.msra.mxu0 0
        %957 = vmatpush.bf16.msra.mxu0 0
        %958 = vmatpush.bf16.msra.mxu0 0
        %959 = vmatpush.bf16.msra.mxu0 %v950
        %960 = vmatmul.bf16.gmra.mxu0 %v947
        %v961 = vpop.f32.mrf.mxu0
        %v962 = vadd.f32 0.0, %v961
        %v963 = vpop.f32.mrf.mxu0
        %964 = vdwg.mxu0
        %v965 = vpack.c.bf16 %v962, %v962
        %v966 = vld [vmem:[#allocation13 + $0x8] sm:$0x3]
        %v968 = vsel %vm581, %v965, 0
        %v971 = vsel %vm640, %v966, 0
        %973 = vmatpush.bf16.msra.mxu0 0
        %974 = vmatpush.bf16.msra.mxu0 0
        %975 = vmatpush.bf16.msra.mxu0 0
        %976 = vmatpush.bf16.msra.mxu0 0
        %977 = vmatpush.bf16.msra.mxu0 0
        %978 = vmatpush.bf16.msra.mxu0 0
        %979 = vmatpush.bf16.msra.mxu0 0
        %980 = vmatpush.bf16.msra.mxu0 %v971
        %981 = vmatmul.bf16.gmra.mxu0 %v968
        %v982 = vpop.f32.mrf.mxu0
        %v983 = vadd.f32 0.0, %v982
        %v984 = vpop.f32.mrf.mxu0
        %985 = vdwg.mxu0
        %v986 = vadd.f32 %v908, %v983
        %987 = vrot.lane.b32.xlu0 %v660, 108
        %v988 = vpop.permute.xlu0 %987
        %989 = vrot.lane.b32.xlu0 %v665, 108
        %v990 = vpop.permute.xlu0 %989
        %v992 = vsel %vm581, %v988, 0
        %v995 = vsel %vm581, %v990, 0
        %997 = vmatpush.bf16.xpose.msra.mxu0 0
        %998 = vmatpush.bf16.xpose.msra.mxu0 0
        %999 = vmatpush.bf16.xpose.msra.mxu0 0
        %1000 = vmatpush.bf16.xpose.msra.mxu0 0
        %1001 = vmatpush.bf16.xpose.msra.mxu0 0
        %1002 = vmatpush.bf16.xpose.msra.mxu0 0
        %1003 = vmatpush.bf16.xpose.msra.mxu0 0
        %1004 = vmatpush.bf16.xpose.msra.mxu0 %v995
        %1005 = vmatmul.bf16.gmra.mxu0 %v992
        %v1006 = vpop.f32.mrf.mxu0
        %v1007 = vadd.f32 %v575, %v1006
        %v1008 = vpop.f32.mrf.mxu0
        %1009 = vdwg.mxu0
        %v1010 = vsel %vm601, %v1007, -inf
        %1011 = vmax.xlane.f32.xlu0 %v1010
        %v1012 = vpop.xlane.xlu0 %1011
        %v1013 = vsub.f32 %v1007, %v1012
        %v1014 = vmul.f32 %v1013, 1.442695
        %v1015 = vpow.pop %v1014
        %v1016 = vsel %vm601, %v1015, 0.0
        %1017 = vadd.xlane.f32.xlu0 %v1016
        %v1018 = vpop.xlane.xlu0 %1017
        %v1019 = vrcp.pop %v1018
        %v1020 = vmul.f32 %v1015, %v1019
        %v1021 = vpack.c.bf16 %v1020, %v1020
        %1022 = vrot.lane.b32.xlu0 %v701, 108
        %v1023 = vpop.permute.xlu0 %1022
        %v1025 = vsel %vm601, %v1021, 0
        %v1028 = vsel %vm618, %v1023, 0
        %1030 = vmatpush.bf16.msra.mxu0 0
        %1031 = vmatpush.bf16.msra.mxu0 0
        %1032 = vmatpush.bf16.msra.mxu0 0
        %1033 = vmatpush.bf16.msra.mxu0 0
        %1034 = vmatpush.bf16.msra.mxu0 0
        %1035 = vmatpush.bf16.msra.mxu0 0
        %1036 = vmatpush.bf16.msra.mxu0 0
        %1037 = vmatpush.bf16.msra.mxu0 %v1028
        %1038 = vmatmul.bf16.gmra.mxu0 %v1025
        %v1039 = vpop.f32.mrf.mxu0
        %v1040 = vadd.f32 0.0, %v1039
        %v1041 = vpop.f32.mrf.mxu0
        %1042 = vdwg.mxu0
        %v1043 = vpack.c.bf16 %v1040, %v1040
        %v1044 = vld [vmem:[#allocation13 + $0x8] sm:$0xc]
        %v1046 = vunpack.c.l.b16 %v1044
        %v1047 = vpack.c.b16 %v1046, %v1046
        %v1048 = vrot.slane %v1047, 2
        %v1050 = vsel %vm581, %v1043, 0
        %v1053 = vsel %vm640, %v1048, 0
        %1055 = vmatpush.bf16.msra.mxu0 0
        %1056 = vmatpush.bf16.msra.mxu0 0
        %1057 = vmatpush.bf16.msra.mxu0 0
        %1058 = vmatpush.bf16.msra.mxu0 0
        %1059 = vmatpush.bf16.msra.mxu0 0
        %1060 = vmatpush.bf16.msra.mxu0 0
        %1061 = vmatpush.bf16.msra.mxu0 0
        %1062 = vmatpush.bf16.msra.mxu0 %v1053
        %1063 = vmatmul.bf16.gmra.mxu0 %v1050
        %v1064 = vpop.f32.mrf.mxu0
        %v1065 = vadd.f32 0.0, %v1064
        %v1066 = vpop.f32.mrf.mxu0
        %1067 = vdwg.mxu0
        %v1068 = vadd.f32 %v986, %v1065
        %1069 = vrot.lane.b32.xlu0 %v660, 104
        %v1070 = vpop.permute.xlu0 %1069
        %1071 = vrot.lane.b32.xlu0 %v665, 104
        %v1072 = vpop.permute.xlu0 %1071
        %v1074 = vsel %vm581, %v1070, 0
        %v1077 = vsel %vm581, %v1072, 0
        %1079 = vmatpush.bf16.xpose.msra.mxu0 0
        %1080 = vmatpush.bf16.xpose.msra.mxu0 0
        %1081 = vmatpush.bf16.xpose.msra.mxu0 0
        %1082 = vmatpush.bf16.xpose.msra.mxu0 0
        %1083 = vmatpush.bf16.xpose.msra.mxu0 0
        %1084 = vmatpush.bf16.xpose.msra.mxu0 0
        %1085 = vmatpush.bf16.xpose.msra.mxu0 0
        %1086 = vmatpush.bf16.xpose.msra.mxu0 %v1077
        %1087 = vmatmul.bf16.gmra.mxu0 %v1074
        %v1088 = vpop.f32.mrf.mxu0
        %v1089 = vadd.f32 %v575, %v1088
        %v1090 = vpop.f32.mrf.mxu0
        %1091 = vdwg.mxu0
        %v1092 = vsel %vm601, %v1089, -inf
        %1093 = vmax.xlane.f32.xlu0 %v1092
        %v1094 = vpop.xlane.xlu0 %1093
        %v1095 = vsub.f32 %v1089, %v1094
        %v1096 = vmul.f32 %v1095, 1.442695
        %v1097 = vpow.pop %v1096
        %v1098 = vsel %vm601, %v1097, 0.0
        %1099 = vadd.xlane.f32.xlu0 %v1098
        %v1100 = vpop.xlane.xlu0 %1099
        %v1101 = vrcp.pop %v1100
        %v1102 = vmul.f32 %v1097, %v1101
        %v1103 = vpack.c.bf16 %v1102, %v1102
        %1104 = vrot.lane.b32.xlu0 %v701, 104
        %v1105 = vpop.permute.xlu0 %1104
        %v1107 = vsel %vm601, %v1103, 0
        %v1110 = vsel %vm618, %v1105, 0
        %1112 = vmatpush.bf16.msra.mxu0 0
        %1113 = vmatpush.bf16.msra.mxu0 0
        %1114 = vmatpush.bf16.msra.mxu0 0
        %1115 = vmatpush.bf16.msra.mxu0 0
        %1116 = vmatpush.bf16.msra.mxu0 0
        %1117 = vmatpush.bf16.msra.mxu0 0
        %1118 = vmatpush.bf16.msra.mxu0 0
        %1119 = vmatpush.bf16.msra.mxu0 %v1110
        %1120 = vmatmul.bf16.gmra.mxu0 %v1107
        %v1121 = vpop.f32.mrf.mxu0
        %v1122 = vadd.f32 0.0, %v1121
        %v1123 = vpop.f32.mrf.mxu0
        %1124 = vdwg.mxu0
        %v1125 = vpack.c.bf16 %v1122, %v1122
        %v1126 = vld [vmem:[#allocation13 + $0xc] sm:$0x3]
        %v1128 = vsel %vm581, %v1125, 0
        %v1131 = vsel %vm640, %v1126, 0
        %1133 = vmatpush.bf16.msra.mxu0 0
        %1134 = vmatpush.bf16.msra.mxu0 0
        %1135 = vmatpush.bf16.msra.mxu0 0
        %1136 = vmatpush.bf16.msra.mxu0 0
        %1137 = vmatpush.bf16.msra.mxu0 0
        %1138 = vmatpush.bf16.msra.mxu0 0
        %1139 = vmatpush.bf16.msra.mxu0 0
        %1140 = vmatpush.bf16.msra.mxu0 %v1131
        %1141 = vmatmul.bf16.gmra.mxu0 %v1128
        %v1142 = vpop.f32.mrf.mxu0
        %v1143 = vadd.f32 0.0, %v1142
        %v1144 = vpop.f32.mrf.mxu0
        %1145 = vdwg.mxu0
        %v1146 = vadd.f32 %v1068, %v1143
        %1147 = vrot.lane.b32.xlu0 %v660, 100
        %v1148 = vpop.permute.xlu0 %1147
        %1149 = vrot.lane.b32.xlu0 %v665, 100
        %v1150 = vpop.permute.xlu0 %1149
        %v1152 = vsel %vm581, %v1148, 0
        %v1155 = vsel %vm581, %v1150, 0
        %1157 = vmatpush.bf16.xpose.msra.mxu0 0
        %1158 = vmatpush.bf16.xpose.msra.mxu0 0
        %1159 = vmatpush.bf16.xpose.msra.mxu0 0
        %1160 = vmatpush.bf16.xpose.msra.mxu0 0
        %1161 = vmatpush.bf16.xpose.msra.mxu0 0
        %1162 = vmatpush.bf16.xpose.msra.mxu0 0
        %1163 = vmatpush.bf16.xpose.msra.mxu0 0
        %1164 = vmatpush.bf16.xpose.msra.mxu0 %v1155
        %1165 = vmatmul.bf16.gmra.mxu0 %v1152
        %v1166 = vpop.f32.mrf.mxu0
        %v1167 = vadd.f32 %v575, %v1166
        %v1168 = vpop.f32.mrf.mxu0
        %1169 = vdwg.mxu0
        %v1170 = vsel %vm601, %v1167, -inf
        %1171 = vmax.xlane.f32.xlu0 %v1170
        %v1172 = vpop.xlane.xlu0 %1171
        %v1173 = vsub.f32 %v1167, %v1172
        %v1174 = vmul.f32 %v1173, 1.442695
        %v1175 = vpow.pop %v1174
        %v1176 = vsel %vm601, %v1175, 0.0
        %1177 = vadd.xlane.f32.xlu0 %v1176
        %v1178 = vpop.xlane.xlu0 %1177
        %v1179 = vrcp.pop %v1178
        %v1180 = vmul.f32 %v1175, %v1179
        %v1181 = vpack.c.bf16 %v1180, %v1180
        %1182 = vrot.lane.b32.xlu0 %v701, 100
        %v1183 = vpop.permute.xlu0 %1182
        %v1185 = vsel %vm601, %v1181, 0
        %v1188 = vsel %vm618, %v1183, 0
        %1190 = vmatpush.bf16.msra.mxu0 0
        %1191 = vmatpush.bf16.msra.mxu0 0
        %1192 = vmatpush.bf16.msra.mxu0 0
        %1193 = vmatpush.bf16.msra.mxu0 0
        %1194 = vmatpush.bf16.msra.mxu0 0
        %1195 = vmatpush.bf16.msra.mxu0 0
        %1196 = vmatpush.bf16.msra.mxu0 0
        %1197 = vmatpush.bf16.msra.mxu0 %v1188
        %1198 = vmatmul.bf16.gmra.mxu0 %v1185
        %v1199 = vpop.f32.mrf.mxu0
        %v1200 = vadd.f32 0.0, %v1199
        %v1201 = vpop.f32.mrf.mxu0
        %1202 = vdwg.mxu0
        %v1203 = vpack.c.bf16 %v1200, %v1200
        %v1204 = vld [vmem:[#allocation13 + $0xc] sm:$0xc]
        %v1206 = vunpack.c.l.b16 %v1204
        %v1207 = vpack.c.b16 %v1206, %v1206
        %v1208 = vrot.slane %v1207, 2
        %v1210 = vsel %vm581, %v1203, 0
        %v1213 = vsel %vm640, %v1208, 0
        %1215 = vmatpush.bf16.msra.mxu0 0
        %1216 = vmatpush.bf16.msra.mxu0 0
        %1217 = vmatpush.bf16.msra.mxu0 0
        %1218 = vmatpush.bf16.msra.mxu0 0
        %1219 = vmatpush.bf16.msra.mxu0 0
        %1220 = vmatpush.bf16.msra.mxu0 0
        %1221 = vmatpush.bf16.msra.mxu0 0
        %1222 = vmatpush.bf16.msra.mxu0 %v1213
        %1223 = vmatmul.bf16.gmra.mxu0 %v1210
        %v1224 = vpop.f32.mrf.mxu0
        %v1225 = vadd.f32 0.0, %v1224
        %v1226 = vpop.f32.mrf.mxu0
        %1227 = vdwg.mxu0
        %v1228 = vadd.f32 %v1146, %v1225
        %1229 = vst.msk [vmem:[%s465] sm:$0xff] %vm556, %v1228
        %s1230 = sand.u32 %s237, 1
        %s1231 = scalar_lea.sflag [#allocation6], %s1230
        %s1232 = sand.u32 %s237, 1
        %s1233 = smul.addr %s1232, 8
        %s1234 = scalar_lea.vmem [#allocation16], %s1233
        // Predicated region
        $region85: #{tpu_custom_call.1} parent=51 // pred_check
          %p1235 = pneg %p247
        $region86: #{tpu_custom_call.1} parent=51 // pred_check_branch
          %1237 = sbr.rel (%p1235) target = $region88
        $region87: #{tpu_custom_call.1} parent=51 // pred_region
          %1239 = vsyncadd %s1231, 0
          %s1240 = sadd.s32 %s35, %s34
          %s1241 = smul.addr %s1240, 8
          %s1242 = scalar_lea.hbm %s8, %s1241
          %s1244 = sshll.u32 %s1234, 4
          %s1245 = int_to_ptr.vmem [resolvable:$true] %s1244
          %s1246 = sshll.u32 %s1242, 4
          %s1247 = int_to_ptr.hbm [resolvable:$true] %s1246
          %1249 = dma.vmem_to_hbm [thread:$0]  %s1245, 128, %s1247, %s1231
        $region88: #{tpu_custom_call.1} parent=51 // pred_fallthru
          _
      $region52: #{tpu_custom_call.1} parent=5 // pred_fallthru
        _
      %p1250 = scmp.le.s32.totalorder 2, %s25
      // Predicated region
      $region89: #{tpu_custom_call.1} parent=5 // pred_check
        %p1251 = pneg %p1250
      $region90: #{tpu_custom_call.1} parent=5 // pred_check_branch
        %1253 = sbr.rel (%p1251) target = $region92
      $region91: #{tpu_custom_call.1} parent=5 // pred_region
        %s1254 = ssub.s32 %s25, 2
        // Predicated region
        $region93: #{tpu_custom_call.1} parent=91 // pred_check
          %p1255 = pneg %p253
        $region94: #{tpu_custom_call.1} parent=91 // pred_check_branch
          %1257 = sbr.rel (%p1255) target = $region96
        $region95: #{tpu_custom_call.1} parent=91 // pred_region
          %s1258 = sand.u32 %s238, 1
          %s1259 = scalar_lea.sflag [#allocation6], %s1258
          %s1260 = sand.u32 %s238, 1
          %s1261 = smul.addr %s1260, 8
          %s1262 = scalar_lea.vmem [#allocation16], %s1261
          %1264 = dma.done %s1259, 128
        $region96: #{tpu_custom_call.1} parent=91 // pred_fallthru
          _
      $region92: #{tpu_custom_call.1} parent=5 // pred_fallthru
        _
    $region6: #{tpu_custom_call.1} parent=1 // loop_footer
      %s29 = sadd.s32 1, %s25
    $region7: #{tpu_custom_call.1} parent=1 // loop_footer_branch
      %24 = sbr.rel target = $region3
    $region8: #{tpu_custom_call.1} parent=1 // loop_exit
      _
    %1265 = vsyncpa [#allocation5], 1
    %s1266 = scalar_lea.sflag [#allocation5], 1
    %1267 = vsyncpa %s1266, 1
    %1268 = vsyncpa [#allocation8], 1
    %s1269 = scalar_lea.sflag [#allocation8], 1
    %1270 = vsyncpa %s1269, 1
    %1271 = vsyncpa [#allocation11], 1
    %1272 = vsyncpa [#allocation14], 1
    %1273 = vsyncpa [#allocation6], 1
    %s1274 = scalar_lea.sflag [#allocation6], 1
    %1275 = vsyncpa %s1274, 1

</llo_original>
